<compile_context>
chip_gen: v5e
topology: v5e:2x2
jax: 0.10.0
libtpu: 0.0.40
codegen_flags: <defaults>
</compile_context>

<pallas_src>
import functools

import jax
import jax.numpy as jnp
from jax.experimental import pallas as pl
from jax.experimental.pallas import tpu as pltpu

D_HID = 128       # SAGEConv hidden width
D_OUT = 64        # SAGEConv output width
NEG_SLOPE = 0.01  # F.leaky_relu default


def _round_up(n, m):
    return ((n + m - 1) // m) * m


def _vmem_limit(np_, tm, tk):
    resident = 2 * np_ * D_HID * 2          # bf16 resident operand (x2 buffers)
    a_tiles = 2 * tm * tk * 2               # bf16 A tiles, double-buffered
    acc = tm * D_HID * 4                    # f32 accumulator
    outs = 2 * 2 * tm * D_HID * 4           # output tiles, double-buffered
    weights = 4 * D_HID * D_HID * 4
    limit = resident + a_tiles + acc + outs + weights + (4 << 20)
    # v7x has only 64 MiB VMEM per TensorCore; cap below that ceiling.
    return min(max(limit, 16 * 1024 * 1024), 56 * 1024 * 1024)


# ----------------------------- Pallas kernels ------------------------------

def _fuse_kernel(x_ref, w_ref, o_ref, acc_ref):
    """o = feature @ W_fuse, K-tiled with an f32 VMEM accumulator."""
    k = pl.program_id(1)

    @pl.when(k == 0)
    def _():
        acc_ref[...] = jnp.zeros_like(acc_ref)

    acc_ref[...] += jnp.dot(x_ref[...], w_ref[...],
                            preferred_element_type=jnp.float32)

    @pl.when(k == pl.num_programs(1) - 1)
    def _():
        o_ref[...] = acc_ref[...].astype(o_ref.dtype)


def _sage1_kernel(a_ref, x_ref, wl_ref, wr_ref, b_ref, w2_ref, h_ref, acc_ref,
                  *, tm, tk):
    """conv1 + LeakyReLU fused with the conv2 premultiply x1 @ [Wl2|Wr2].

    a_ref: (tm, tk) bf16 row-normalized adjacency tile.
    x_ref: (NP, 128) bf16 resident x0 (constant-index BlockSpec).
    Output h_ref: (tm, 128) bf16 packed [x1@Wl2 | x1@Wr2] (lane-dense store).
    """
    i = pl.program_id(0)
    k = pl.program_id(1)

    @pl.when(k == 0)
    def _():
        acc_ref[...] = jnp.zeros_like(acc_ref)

    # Native bf16 x bf16 MXU path, f32 accumulation.  A is pre-normalized, so
    # acc ends up as mean_agg(x0) for this row tile.
    src = pl.multiple_of(k * tk, tk)
    acc_ref[...] += jnp.dot(a_ref[...], x_ref[pl.ds(src, tk), :],
                            preferred_element_type=jnp.float32)

    @pl.when(k == pl.num_programs(1) - 1)
    def _():
        dst = pl.multiple_of(i * tm, tm)
        x_self = x_ref[pl.ds(dst, tm), :].astype(jnp.float32)
        x1 = (jnp.dot(acc_ref[...], wl_ref[...],
                      preferred_element_type=jnp.float32)
              + jnp.dot(x_self, wr_ref[...],
                        preferred_element_type=jnp.float32)
              + b_ref[...])
        x1 = jnp.where(x1 >= 0.0, x1, NEG_SLOPE * x1)        # LeakyReLU
        # TODO(synk): training-mode dropout(p=0.5) would use
        # pltpu.prng_random_bits here; eval mode is identity.
        h_ref[...] = jnp.dot(x1, w2_ref[...],
                             preferred_element_type=jnp.float32
                             ).astype(h_ref.dtype)


def _sage2_kernel(a_ref, h_ref, b_ref, o_ref, acc_ref, *, tm, tk):
    """conv2 (reassociated): out = A_norm @ (x1@Wl2) + x1@Wr2 + b2.

    h_ref: (NP, 128) bf16 resident packed [x1@Wl2 | x1@Wr2].
    The aggregation runs 128-wide (lane-dense bf16 matmul); the two 64-wide
    halves are split only once per row tile at finalize.
    """
    i = pl.program_id(0)
    k = pl.program_id(1)

    @pl.when(k == 0)
    def _():
        acc_ref[...] = jnp.zeros_like(acc_ref)

    src = pl.multiple_of(k * tk, tk)
    acc_ref[...] += jnp.dot(a_ref[...], h_ref[pl.ds(src, tk), :],
                            preferred_element_type=jnp.float32)

    @pl.when(k == pl.num_programs(1) - 1)
    def _():
        dst = pl.multiple_of(i * tm, tm)
        h_self = h_ref[pl.ds(dst, tm), :].astype(jnp.float32)
        agg = acc_ref[...]
        out = agg[:, :D_OUT] + h_self[:, D_OUT:] + b_ref[...]
        # TODO(synk): training-mode dropout(p=0.2); eval mode is identity.
        o_ref[...] = out.astype(o_ref.dtype)


# ------------------------------ Wrappers ------------------------------------

def pallas_fuse(feat_p, w_p, *, tm, tk):
    MP, KP = feat_p.shape
    H = w_p.shape[1]
    grid = (MP // tm, KP // tk)
    return pl.pallas_call(
        _fuse_kernel,
        out_shape=jax.ShapeDtypeStruct((MP, H), jnp.float32),
        grid=grid,
        in_specs=[pl.BlockSpec((tm, tk), lambda i, k: (i, k)),
                  pl.BlockSpec((tk, H), lambda i, k: (k, 0))],
        out_specs=pl.BlockSpec((tm, H), lambda i, k: (i, 0)),
        scratch_shapes=[pltpu.VMEM((tm, H), jnp.float32)],
        compiler_params=pltpu.CompilerParams(
            dimension_semantics=("parallel", "arbitrary"),
            vmem_limit_bytes=32 * 1024 * 1024),
        cost_estimate=pl.CostEstimate(
            flops=2 * MP * KP * H, transcendentals=0,
            bytes_accessed=4 * (MP * KP + KP * H + MP * H)),
    )(feat_p, w_p)


def pallas_sage1(a_norm, x0_bf16, wl1, wr1, b1, w2p, *, tm, tk):
    NP = a_norm.shape[0]
    grid = (NP // tm, NP // tk)
    kernel = functools.partial(_sage1_kernel, tm=tm, tk=tk)
    flops = 2 * NP * NP * D_HID + 6 * NP * D_HID * D_HID
    bytes_acc = (2 * NP * NP + 2 * NP * D_HID + 2 * NP * D_HID
                 + 4 * 4 * D_HID * D_HID)
    return pl.pallas_call(
        kernel,
        out_shape=jax.ShapeDtypeStruct((NP, D_HID), jnp.bfloat16),
        grid=grid,
        in_specs=[
            pl.BlockSpec((tm, tk), lambda i, k: (i, k)),         # A_norm bf16
            pl.BlockSpec((NP, D_HID), lambda i, k: (0, 0)),      # x0 resident
            pl.BlockSpec((D_HID, D_HID), lambda i, k: (0, 0)),   # Wl1
            pl.BlockSpec((D_HID, D_HID), lambda i, k: (0, 0)),   # Wr1
            pl.BlockSpec((1, D_HID), lambda i, k: (0, 0)),       # b1
            pl.BlockSpec((D_HID, D_HID), lambda i, k: (0, 0)),   # [Wl2|Wr2]
        ],
        out_specs=pl.BlockSpec((tm, D_HID), lambda i, k: (i, 0)),
        scratch_shapes=[pltpu.VMEM((tm, D_HID), jnp.float32)],
        compiler_params=pltpu.CompilerParams(
            dimension_semantics=("parallel", "arbitrary"),
            vmem_limit_bytes=_vmem_limit(NP, tm, tk)),
        cost_estimate=pl.CostEstimate(flops=flops, transcendentals=0,
                                      bytes_accessed=bytes_acc),
    )(a_norm, x0_bf16, wl1, wr1, b1, w2p)


def pallas_sage2(a_norm, h_packed, b2, *, tm, tk):
    NP = a_norm.shape[0]
    grid = (NP // tm, NP // tk)
    kernel = functools.partial(_sage2_kernel, tm=tm, tk=tk)
    return pl.pallas_call(
        kernel,
        out_shape=jax.ShapeDtypeStruct((NP, D_OUT), jnp.float32),
        grid=grid,
        in_specs=[
            pl.BlockSpec((tm, tk), lambda i, k: (i, k)),         # A_norm bf16
            pl.BlockSpec((NP, D_HID), lambda i, k: (0, 0)),      # h resident
            pl.BlockSpec((1, D_OUT), lambda i, k: (0, 0)),       # b2
        ],
        out_specs=pl.BlockSpec((tm, D_OUT), lambda i, k: (i, 0)),
        scratch_shapes=[pltpu.VMEM((tm, D_HID), jnp.float32)],
        compiler_params=pltpu.CompilerParams(
            dimension_semantics=("parallel", "arbitrary"),
            vmem_limit_bytes=_vmem_limit(NP, tm, tk)),
        cost_estimate=pl.CostEstimate(
            flops=2 * NP * NP * D_HID, transcendentals=0,
            bytes_accessed=2 * NP * NP + 2 * NP * D_HID + 4 * NP * D_OUT),
    )(a_norm, h_packed, b2)


# ---------------------------- Parameter setup -------------------------------

def xavier_uniform(key, shape):
    fan_in, fan_out = shape[1], shape[0]
    limit = jnp.sqrt(6.0 / (fan_in + fan_out))
    return jax.random.uniform(key, shape, jnp.float32, -limit, limit)


def init_params(key, user_num, feat_num):
    ks = jax.random.split(key, 8)
    return {
        # nn.Linear(feat_num, 128, bias=False): stored (in, out)
        "w_fuse": xavier_uniform(ks[0], (128, feat_num)).T,
        # nn.Parameter xavier_uniform (user_num, 128)
        "user": xavier_uniform(ks[1], (user_num, 128)),
        # SAGEConv(128, 128): lin_l (with bias), lin_r (no bias); stored (in, out)
        "wl1": xavier_uniform(ks[2], (128, 128)).T,
        "bl1": jnp.zeros((128,), jnp.float32),
        "wr1": xavier_uniform(ks[3], (128, 128)).T,
        # SAGEConv(128, 64)
        "wl2": xavier_uniform(ks[4], (64, 128)).T,
        "bl2": jnp.zeros((64,), jnp.float32),
        "wr2": xavier_uniform(ks[5], (64, 128)).T,
    }


def build_adjacency(edge_index, num_nodes, n_pad):
    """Row-normalized (mean) adjacency A[i,j] = count(j->i)/deg_i as bf16.

    Degree is clamped at 1 so padded / isolated rows stay all-zero (their
    aggregation is 0, matching PyG mean aggregation for isolated nodes)."""
    del num_nodes  # padded rows handled via zero counts
    src, dst = edge_index[0], edge_index[1]
    counts = jnp.zeros((n_pad, n_pad), jnp.float32).at[dst, src].add(1.0)
    deg = jnp.maximum(counts.sum(axis=1, keepdims=True), 1.0)
    return (counts / deg).astype(jnp.bfloat16)


# ------------------------------ GCN forward ---------------------------------

def gcn_forward(params, feature, edge_index, user_num, *, node_tile=1024):
    item_num, feat_num = feature.shape
    n = user_num + item_num

    # Node tile: multiple of 128, grown toward node_tile at large N; padding
    # guarantees at least two row tiles so v7x's two TCs both get work.
    tm = min(node_tile, 128 * max(1, pl.cdiv(n, 2 * 128)))
    NP = max(_round_up(n, tm), 2 * tm)
    tk = tm

    # Feature-fusion linear (lane-dense, K-tiled).
    tmf = min(256, _round_up(item_num, 8))
    MP = _round_up(item_num, tmf)
    tkf = min(512, _round_up(feat_num, 128))
    KP = _round_up(feat_num, tkf)
    feat_p = jnp.pad(feature, ((0, MP - item_num), (0, KP - feat_num)))
    wf_p = jnp.pad(params["w_fuse"], ((0, KP - feat_num), (0, 0)))
    fused = pallas_fuse(feat_p, wf_p, tm=tmf, tk=tkf)[:item_num]   # (item, 128)

    x0 = jnp.concatenate([params["user"], fused], axis=0)          # glue (JAX)
    x0_bf16 = jnp.pad(x0, ((0, NP - n), (0, 0))).astype(jnp.bfloat16)

    a_norm = build_adjacency(edge_index, n, NP)                    # glue (JAX)

    # conv1 + LeakyReLU, fused with the conv2 premultiply x1 @ [Wl2|Wr2];
    # output is one packed lane-dense (NP, 128) bf16 tensor.
    w2_packed = jnp.concatenate([params["wl2"], params["wr2"]], axis=1)
    h_packed = pallas_sage1(a_norm, x0_bf16,
                            params["wl1"], params["wr1"],
                            params["bl1"].reshape(1, D_HID), w2_packed,
                            tm=tm, tk=tk)

    # conv2 aggregation (reassociated) + residual + bias.
    out = pallas_sage2(a_norm, h_packed,
                       params["bl2"].reshape(1, D_OUT), tm=tm, tk=tk)
    return out[:n]


# ---------------------------- Pure-JAX reference -----------------------------

def gcn_reference(params, feature, edge_index, user_num):
    n = user_num + feature.shape[0]
    src, dst = edge_index[0], edge_index[1]
    a = jnp.zeros((n, n), jnp.float32).at[dst, src].add(1.0)
    deg = jnp.maximum(jnp.zeros((n,), jnp.float32).at[dst].add(1.0), 1.0)
    a_norm = a / deg[:, None]
    x0 = jnp.concatenate([params["user"], feature @ params["w_fuse"]], axis=0)
    x1 = (a_norm @ x0) @ params["wl1"] + params["bl1"] + x0 @ params["wr1"]
    x1 = jnp.where(x1 >= 0.0, x1, NEG_SLOPE * x1)
    x2 = (a_norm @ x1) @ params["wl2"] + params["bl2"] + x1 @ params["wr2"]
    return x2


# --------------------------------- Main --------------------------------------

if __name__ == "__main__":
    USER_NUM = 8
    ITEM_NUM = 16
    FEAT_NUM = 32
    NUM_NODES = USER_NUM + ITEM_NUM
    NUM_EDGES = 64

    key = jax.random.PRNGKey(0)
    k_param, k_feat, k_src, k_dst = jax.random.split(key, 4)

    params = init_params(k_param, USER_NUM, FEAT_NUM)
    feature = jax.random.normal(k_feat, (ITEM_NUM, FEAT_NUM), jnp.float32)

    # Deterministic synthetic graph, PyG convention: row 0 = src, row 1 = dst.
    src = jax.random.randint(k_src, (NUM_EDGES,), 0, NUM_NODES, dtype=jnp.int32)
    dst = jax.random.randint(k_dst, (NUM_EDGES,), 0, NUM_NODES, dtype=jnp.int32)
    edge_index = jnp.stack([src, dst], axis=0)

    fwd = jax.jit(functools.partial(gcn_forward, user_num=USER_NUM))
    out = jax.block_until_ready(fwd(params, feature, edge_index))
    assert out.shape == (NUM_NODES, 64), out.shape

    ref = gcn_reference(params, feature, edge_index, USER_NUM)
    rel_err = float(jnp.max(jnp.abs(out - ref)) / (jnp.max(jnp.abs(ref)) + 1e-8))
    assert rel_err < 5e-2, f"mismatch vs reference: rel err {rel_err}"

    print("KERNEL_OK")
</pallas_src>

<mosaic_0001>
module attributes {stable_mosaic.version = 11 : i64} {
  func.func @_fuse_kernel(%arg0: i32, %arg1: i32, %arg2: memref<16x128xf32, #tpu.memory_space<vmem>>, %arg3: memref<128x128xf32, #tpu.memory_space<vmem>>, %arg4: memref<16x128xf32, #tpu.memory_space<vmem>>, %arg5: memref<16x128xf32, #tpu.memory_space<vmem>>) attributes {dimension_semantics = [#tpu.dimension_semantics<parallel>, #tpu.dimension_semantics<arbitrary>], iteration_bounds = array<i64: 1, 1>, scalar_prefetch = 0 : i64, scratch_operands = 1 : i64, tpu.core_type = #tpu.core_type<tc>, window_params = [{transform_indices = @transform_0, window_bounds = array<i64: 16, 128>}, {transform_indices = @transform_1, window_bounds = array<i64: 128, 128>}, {transform_indices = @transform_2, window_bounds = array<i64: 16, 128>}]} {
    %c0_i32 = arith.constant 0 : i32
    %0 = arith.cmpi eq, %arg1, %c0_i32 : i32
    %1 = arith.extui %0 : i1 to i32
    %c0_i32_0 = arith.constant 0 : i32
    %2 = arith.cmpi ne, %1, %c0_i32_0 : i32
    scf.if %2 {
      %cst_10 = arith.constant 0.000000e+00 : f32
      %12 = vector.broadcast %cst_10 : f32 to vector<16x128xf32>
      %c0_11 = arith.constant 0 : index
      %c0_12 = arith.constant 0 : index
      %13 = vector.load %arg5[%c0_11, %c0_12] : memref<16x128xf32, #tpu.memory_space<vmem>>, vector<16x128xf32>
      tpu.vector_store %arg5[%c0_11, %c0_12], %12 {strides = array<i32>} : memref<16x128xf32, #tpu.memory_space<vmem>>, vector<16x128xf32>,
    } else {
    }
    %c0 = arith.constant 0 : index
    %c0_1 = arith.constant 0 : index
    %3 = vector.load %arg5[%c0, %c0_1] : memref<16x128xf32, #tpu.memory_space<vmem>>, vector<16x128xf32>
    %c0_2 = arith.constant 0 : index
    %c0_3 = arith.constant 0 : index
    %4 = vector.load %arg2[%c0_2, %c0_3] : memref<16x128xf32, #tpu.memory_space<vmem>>, vector<16x128xf32>
    %c0_4 = arith.constant 0 : index
    %c0_5 = arith.constant 0 : index
    %5 = vector.load %arg3[%c0_4, %c0_5] : memref<128x128xf32, #tpu.memory_space<vmem>>, vector<128x128xf32>
    %cst = arith.constant dense<0.000000e+00> : vector<16x128xf32>
    %6 = tpu.matmul %4, %5, %cst {dimension_numbers = #tpu.dot_dimension_numbers<[1], [0], [0], [1], [0, 0, 1, 1], [], []>} : vector<16x128xf32>, vector<128x128xf32>, vector<16x128xf32> -> vector<16x128xf32>
    %7 = arith.addf %3, %6 : vector<16x128xf32>
    %c0_6 = arith.constant 0 : index
    %c0_7 = arith.constant 0 : index
    %8 = vector.load %arg5[%c0_6, %c0_7] : memref<16x128xf32, #tpu.memory_space<vmem>>, vector<16x128xf32>
    tpu.vector_store %arg5[%c0_6, %c0_7], %7 {strides = array<i32>} : memref<16x128xf32, #tpu.memory_space<vmem>>, vector<16x128xf32>,
    %c0_i32_8 = arith.constant 0 : i32
    %9 = arith.cmpi eq, %arg1, %c0_i32_8 : i32
    %10 = arith.extui %9 : i1 to i32
    %c0_i32_9 = arith.constant 0 : i32
    %11 = arith.cmpi ne, %10, %c0_i32_9 : i32
    scf.if %11 {
      %c0_10 = arith.constant 0 : index
      %c0_11 = arith.constant 0 : index
      %12 = vector.load %arg5[%c0_10, %c0_11] : memref<16x128xf32, #tpu.memory_space<vmem>>, vector<16x128xf32>
      %c0_12 = arith.constant 0 : index
      %c0_13 = arith.constant 0 : index
      %13 = vector.load %arg4[%c0_12, %c0_13] : memref<16x128xf32, #tpu.memory_space<vmem>>, vector<16x128xf32>
      tpu.vector_store %arg4[%c0_12, %c0_13], %12 {strides = array<i32>} : memref<16x128xf32, #tpu.memory_space<vmem>>, vector<16x128xf32>,
    } else {
    }
    return
  }
  func.func @transform_0(%arg0: i32, %arg1: i32) -> (i32, i32) {
    %c0_i32 = arith.constant 0 : i32
    return %arg0, %arg1 : i32, i32
  }
  func.func @transform_1(%arg0: i32, %arg1: i32) -> (i32, i32) {
    %c0_i32 = arith.constant 0 : i32
    %c0_i32_0 = arith.constant 0 : i32
    return %arg1, %c0_i32 : i32, i32
  }
  func.func @transform_2(%arg0: i32, %arg1: i32) -> (i32, i32) {
    %c0_i32 = arith.constant 0 : i32
    %c0_i32_0 = arith.constant 0 : i32
    return %arg0, %c0_i32 : i32, i32
  }
}

module attributes {stable_mosaic.version = 11 : i64} {
  func.func @_sage2_kernel(%arg0: i32, %arg1: i32, %arg2: memref<128x128xbf16, #tpu.memory_space<vmem>>, %arg3: memref<256x128xbf16, #tpu.memory_space<vmem>>, %arg4: memref<1x64xf32, #tpu.memory_space<vmem>>, %arg5: memref<128x64xf32, #tpu.memory_space<vmem>>, %arg6: memref<128x128xf32, #tpu.memory_space<vmem>>) attributes {dimension_semantics = [#tpu.dimension_semantics<parallel>, #tpu.dimension_semantics<arbitrary>], iteration_bounds = array<i64: 2, 2>, scalar_prefetch = 0 : i64, scratch_operands = 1 : i64, tpu.core_type = #tpu.core_type<tc>, window_params = [{transform_indices = @transform_0, window_bounds = array<i64: 128, 128>}, {pipeline_mode = #tpu.pipeline_mode<synchronous>, transform_indices = @transform_1, window_bounds = array<i64: 256, 128>}, {pipeline_mode = #tpu.pipeline_mode<synchronous>, transform_indices = @transform_2, window_bounds = array<i64: 1, 64>}, {transform_indices = @transform_3, window_bounds = array<i64: 128, 64>}]} {
    %c0_i32 = arith.constant 0 : i32
    %0 = arith.cmpi eq, %arg1, %c0_i32 : i32
    %1 = arith.extui %0 : i1 to i32
    %c0_i32_0 = arith.constant 0 : i32
    %2 = arith.cmpi ne, %1, %c0_i32_0 : i32
    scf.if %2 {
      %cst_8 = arith.constant 0.000000e+00 : f32
      %15 = vector.broadcast %cst_8 : f32 to vector<128x128xf32>
      %c0_9 = arith.constant 0 : index
      %c0_10 = arith.constant 0 : index
      %16 = vector.load %arg6[%c0_9, %c0_10] : memref<128x128xf32, #tpu.memory_space<vmem>>, vector<128x128xf32>
      tpu.vector_store %arg6[%c0_9, %c0_10], %15 {strides = array<i32>} : memref<128x128xf32, #tpu.memory_space<vmem>>, vector<128x128xf32>,
    } else {
    }
    %c128_i32 = arith.constant 128 : i32
    %3 = arith.muli %arg1, %c128_i32 : i32
    %4 = tpu.assume_multiple %3, 128 : i32
    %c0 = arith.constant 0 : index
    %c0_1 = arith.constant 0 : index
    %5 = vector.load %arg6[%c0, %c0_1] : memref<128x128xf32, #tpu.memory_space<vmem>>, vector<128x128xf32>
    %c0_2 = arith.constant 0 : index
    %c0_3 = arith.constant 0 : index
    %6 = vector.load %arg2[%c0_2, %c0_3] : memref<128x128xbf16, #tpu.memory_space<vmem>>, vector<128x128xbf16>
    %7 = arith.index_cast %4 : i32 to index
    %c0_4 = arith.constant 0 : index
    %8 = vector.load %arg3[%7, %c0_4] : memref<256x128xbf16, #tpu.memory_space<vmem>>, vector<128x128xbf16>
    %cst = arith.constant dense<0.000000e+00> : vector<128x128xf32>
    %9 = tpu.matmul %6, %8, %cst {dimension_numbers = #tpu.dot_dimension_numbers<[1], [0], [0], [1], [0, 0, 1, 1], [], []>} : vector<128x128xbf16>, vector<128x128xbf16>, vector<128x128xf32> -> vector<128x128xf32>
    %10 = arith.addf %5, %9 : vector<128x128xf32>
    %c0_5 = arith.constant 0 : index
    %c0_6 = arith.constant 0 : index
    %11 = vector.load %arg6[%c0_5, %c0_6] : memref<128x128xf32, #tpu.memory_space<vmem>>, vector<128x128xf32>
    tpu.vector_store %arg6[%c0_5, %c0_6], %10 {strides = array<i32>} : memref<128x128xf32, #tpu.memory_space<vmem>>, vector<128x128xf32>,
    %c1_i32 = arith.constant 1 : i32
    %12 = arith.cmpi eq, %arg1, %c1_i32 : i32
    %13 = arith.extui %12 : i1 to i32
    %c0_i32_7 = arith.constant 0 : i32
    %14 = arith.cmpi ne, %13, %c0_i32_7 : i32
    scf.if %14 {
      %c128_i32_8 = arith.constant 128 : i32
      %15 = arith.muli %arg0, %c128_i32_8 : i32
      %16 = tpu.assume_multiple %15, 128 : i32
      %17 = arith.index_cast %16 : i32 to index
      %c0_9 = arith.constant 0 : index
      %18 = vector.load %arg3[%17, %c0_9] : memref<256x128xbf16, #tpu.memory_space<vmem>>, vector<128x128xbf16>
      %19 = arith.extf %18 : vector<128x128xbf16> to vector<128x128xf32>
      %c0_10 = arith.constant 0 : index
      %c0_11 = arith.constant 0 : index
      %20 = vector.load %arg6[%c0_10, %c0_11] : memref<128x128xf32, #tpu.memory_space<vmem>>, vector<128x128xf32>
      %21 = vector.extract_strided_slice %20 {offsets = [0, 0], sizes = [128, 64], strides = [1, 1]} : vector<128x128xf32> to vector<128x64xf32>
      %22 = vector.extract_strided_slice %19 {offsets = [0, 64], sizes = [128, 64], strides = [1, 1]} : vector<128x128xf32> to vector<128x64xf32>
      %23 = arith.addf %21, %22 : vector<128x64xf32>
      %c0_12 = arith.constant 0 : index
      %c0_13 = arith.constant 0 : index
      %24 = vector.load %arg4[%c0_12, %c0_13] : memref<1x64xf32, #tpu.memory_space<vmem>>, vector<1x64xf32>
      %25 = vector.broadcast %24 : vector<1x64xf32> to vector<128x64xf32>
      %26 = arith.addf %23, %25 : vector<128x64xf32>
      %c0_14 = arith.constant 0 : index
      %c0_15 = arith.constant 0 : index
      %27 = vector.load %arg5[%c0_14, %c0_15] : memref<128x64xf32, #tpu.memory_space<vmem>>, vector<128x64xf32>
      tpu.vector_store %arg5[%c0_14, %c0_15], %26 {strides = array<i32>} : memref<128x64xf32, #tpu.memory_space<vmem>>, vector<128x64xf32>,
    } else {
    }
    return
  }
  func.func @transform_0(%arg0: i32, %arg1: i32) -> (i32, i32) {
    %c0_i32 = arith.constant 0 : i32
    return %arg0, %arg1 : i32, i32
  }
  func.func @transform_1(%arg0: i32, %arg1: i32) -> (i32, i32) {
    %c0_i32 = arith.constant 0 : i32
    %c0_i32_0 = arith.constant 0 : i32
    %c0_i32_1 = arith.constant 0 : i32
    return %c0_i32, %c0_i32_0 : i32, i32
  }
  func.func @transform_2(%arg0: i32, %arg1: i32) -> (i32, i32) {
    %c0_i32 = arith.constant 0 : i32
    %c0_i32_0 = arith.constant 0 : i32
    %c0_i32_1 = arith.constant 0 : i32
    return %c0_i32, %c0_i32_0 : i32, i32
  }
  func.func @transform_3(%arg0: i32, %arg1: i32) -> (i32, i32) {
    %c0_i32 = arith.constant 0 : i32
    %c0_i32_0 = arith.constant 0 : i32
    return %arg0, %c0_i32 : i32, i32
  }
}

module attributes {stable_mosaic.version = 11 : i64} {
  func.func @_sage1_kernel(%arg0: i32, %arg1: i32, %arg2: memref<128x128xbf16, #tpu.memory_space<vmem>>, %arg3: memref<256x128xbf16, #tpu.memory_space<vmem>>, %arg4: memref<128x128xf32, #tpu.memory_space<vmem>>, %arg5: memref<128x128xf32, #tpu.memory_space<vmem>>, %arg6: memref<1x128xf32, #tpu.memory_space<vmem>>, %arg7: memref<128x128xf32, #tpu.memory_space<vmem>>, %arg8: memref<128x128xbf16, #tpu.memory_space<vmem>>, %arg9: memref<128x128xf32, #tpu.memory_space<vmem>>) attributes {dimension_semantics = [#tpu.dimension_semantics<parallel>, #tpu.dimension_semantics<arbitrary>], iteration_bounds = array<i64: 2, 2>, scalar_prefetch = 0 : i64, scratch_operands = 1 : i64, tpu.core_type = #tpu.core_type<tc>, window_params = [{transform_indices = @transform_0, window_bounds = array<i64: 128, 128>}, {pipeline_mode = #tpu.pipeline_mode<synchronous>, transform_indices = @transform_1, window_bounds = array<i64: 256, 128>}, {pipeline_mode = #tpu.pipeline_mode<synchronous>, transform_indices = @transform_2, window_bounds = array<i64: 128, 128>}, {pipeline_mode = #tpu.pipeline_mode<synchronous>, transform_indices = @transform_3, window_bounds = array<i64: 128, 128>}, {pipeline_mode = #tpu.pipeline_mode<synchronous>, transform_indices = @transform_4, window_bounds = array<i64: 1, 128>}, {pipeline_mode = #tpu.pipeline_mode<synchronous>, transform_indices = @transform_5, window_bounds = array<i64: 128, 128>}, {transform_indices = @transform_6, window_bounds = array<i64: 128, 128>}]} {
    %c0_i32 = arith.constant 0 : i32
    %0 = arith.cmpi eq, %arg1, %c0_i32 : i32
    %1 = arith.extui %0 : i1 to i32
    %c0_i32_0 = arith.constant 0 : i32
    %2 = arith.cmpi ne, %1, %c0_i32_0 : i32
    scf.if %2 {
      %cst_8 = arith.constant 0.000000e+00 : f32
      %15 = vector.broadcast %cst_8 : f32 to vector<128x128xf32>
      %c0_9 = arith.constant 0 : index
      %c0_10 = arith.constant 0 : index
      %16 = vector.load %arg9[%c0_9, %c0_10] : memref<128x128xf32, #tpu.memory_space<vmem>>, vector<128x128xf32>
      tpu.vector_store %arg9[%c0_9, %c0_10], %15 {strides = array<i32>} : memref<128x128xf32, #tpu.memory_space<vmem>>, vector<128x128xf32>,
    } else {
    }
    %c128_i32 = arith.constant 128 : i32
    %3 = arith.muli %arg1, %c128_i32 : i32
    %4 = tpu.assume_multiple %3, 128 : i32
    %c0 = arith.constant 0 : index
    %c0_1 = arith.constant 0 : index
    %5 = vector.load %arg9[%c0, %c0_1] : memref<128x128xf32, #tpu.memory_space<vmem>>, vector<128x128xf32>
    %c0_2 = arith.constant 0 : index
    %c0_3 = arith.constant 0 : index
    %6 = vector.load %arg2[%c0_2, %c0_3] : memref<128x128xbf16, #tpu.memory_space<vmem>>, vector<128x128xbf16>
    %7 = arith.index_cast %4 : i32 to index
    %c0_4 = arith.constant 0 : index
    %8 = vector.load %arg3[%7, %c0_4] : memref<256x128xbf16, #tpu.memory_space<vmem>>, vector<128x128xbf16>
    %cst = arith.constant dense<0.000000e+00> : vector<128x128xf32>
    %9 = tpu.matmul %6, %8, %cst {dimension_numbers = #tpu.dot_dimension_numbers<[1], [0], [0], [1], [0, 0, 1, 1], [], []>} : vector<128x128xbf16>, vector<128x128xbf16>, vector<128x128xf32> -> vector<128x128xf32>
    %10 = arith.addf %5, %9 : vector<128x128xf32>
    %c0_5 = arith.constant 0 : index
    %c0_6 = arith.constant 0 : index
    %11 = vector.load %arg9[%c0_5, %c0_6] : memref<128x128xf32, #tpu.memory_space<vmem>>, vector<128x128xf32>
    tpu.vector_store %arg9[%c0_5, %c0_6], %10 {strides = array<i32>} : memref<128x128xf32, #tpu.memory_space<vmem>>, vector<128x128xf32>,
    %c1_i32 = arith.constant 1 : i32
    %12 = arith.cmpi eq, %arg1, %c1_i32 : i32
    %13 = arith.extui %12 : i1 to i32
    %c0_i32_7 = arith.constant 0 : i32
    %14 = arith.cmpi ne, %13, %c0_i32_7 : i32
    scf.if %14 {
      %c128_i32_8 = arith.constant 128 : i32
      %15 = arith.muli %arg0, %c128_i32_8 : i32
      %16 = tpu.assume_multiple %15, 128 : i32
      %17 = arith.index_cast %16 : i32 to index
      %c0_9 = arith.constant 0 : index
      %18 = vector.load %arg3[%17, %c0_9] : memref<256x128xbf16, #tpu.memory_space<vmem>>, vector<128x128xbf16>
      %19 = arith.extf %18 : vector<128x128xbf16> to vector<128x128xf32>
      %c0_10 = arith.constant 0 : index
      %c0_11 = arith.constant 0 : index
      %20 = vector.load %arg9[%c0_10, %c0_11] : memref<128x128xf32, #tpu.memory_space<vmem>>, vector<128x128xf32>
      %c0_12 = arith.constant 0 : index
      %c0_13 = arith.constant 0 : index
      %21 = vector.load %arg4[%c0_12, %c0_13] : memref<128x128xf32, #tpu.memory_space<vmem>>, vector<128x128xf32>
      %cst_14 = arith.constant dense<0.000000e+00> : vector<128x128xf32>
      %22 = tpu.matmul %20, %21, %cst_14 {dimension_numbers = #tpu.dot_dimension_numbers<[1], [0], [0], [1], [0, 0, 1, 1], [], []>} : vector<128x128xf32>, vector<128x128xf32>, vector<128x128xf32> -> vector<128x128xf32>
      %c0_15 = arith.constant 0 : index
      %c0_16 = arith.constant 0 : index
      %23 = vector.load %arg5[%c0_15, %c0_16] : memref<128x128xf32, #tpu.memory_space<vmem>>, vector<128x128xf32>
      %cst_17 = arith.constant dense<0.000000e+00> : vector<128x128xf32>
      %24 = tpu.matmul %19, %23, %cst_17 {dimension_numbers = #tpu.dot_dimension_numbers<[1], [0], [0], [1], [0, 0, 1, 1], [], []>} : vector<128x128xf32>, vector<128x128xf32>, vector<128x128xf32> -> vector<128x128xf32>
      %25 = arith.addf %22, %24 : vector<128x128xf32>
      %c0_18 = arith.constant 0 : index
      %c0_19 = arith.constant 0 : index
      %26 = vector.load %arg6[%c0_18, %c0_19] : memref<1x128xf32, #tpu.memory_space<vmem>>, vector<1x128xf32>
      %27 = vector.broadcast %26 : vector<1x128xf32> to vector<128x128xf32>
      %28 = arith.addf %25, %27 : vector<128x128xf32>
      %cst_20 = arith.constant 0.000000e+00 : f32
      %29 = vector.broadcast %cst_20 : f32 to vector<128x128xf32>
      %30 = arith.cmpf oge, %28, %29 : vector<128x128xf32>
      %cst_21 = arith.constant 0.00999999977 : f32
      %31 = vector.broadcast %cst_21 : f32 to vector<128x128xf32>
      %32 = arith.mulf %31, %28 : vector<128x128xf32>
      %33 = arith.select %30, %28, %32 : vector<128x128xi1>, vector<128x128xf32>
      %c0_22 = arith.constant 0 : index
      %c0_23 = arith.constant 0 : index
      %34 = vector.load %arg7[%c0_22, %c0_23] : memref<128x128xf32, #tpu.memory_space<vmem>>, vector<128x128xf32>
      %cst_24 = arith.constant dense<0.000000e+00> : vector<128x128xf32>
      %35 = tpu.matmul %33, %34, %cst_24 {dimension_numbers = #tpu.dot_dimension_numbers<[1], [0], [0], [1], [0, 0, 1, 1], [], []>} : vector<128x128xf32>, vector<128x128xf32>, vector<128x128xf32> -> vector<128x128xf32>
      %36 = arith.truncf %35 : vector<128x128xf32> to vector<128x128xbf16>
      %c0_25 = arith.constant 0 : index
      %c0_26 = arith.constant 0 : index
      %37 = vector.load %arg8[%c0_25, %c0_26] : memref<128x128xbf16, #tpu.memory_space<vmem>>, vector<128x128xbf16>
      tpu.vector_store %arg8[%c0_25, %c0_26], %36 {strides = array<i32>} : memref<128x128xbf16, #tpu.memory_space<vmem>>, vector<128x128xbf16>,
    } else {
    }
    return
  }
  func.func @transform_0(%arg0: i32, %arg1: i32) -> (i32, i32) {
    %c0_i32 = arith.constant 0 : i32
    return %arg0, %arg1 : i32, i32
  }
  func.func @transform_1(%arg0: i32, %arg1: i32) -> (i32, i32) {
    %c0_i32 = arith.constant 0 : i32
    %c0_i32_0 = arith.constant 0 : i32
    %c0_i32_1 = arith.constant 0 : i32
    return %c0_i32, %c0_i32_0 : i32, i32
  }
  func.func @transform_2(%arg0: i32, %arg1: i32) -> (i32, i32) {
    %c0_i32 = arith.constant 0 : i32
    %c0_i32_0 = arith.constant 0 : i32
    %c0_i32_1 = arith.constant 0 : i32
    return %c0_i32, %c0_i32_0 : i32, i32
  }
  func.func @transform_3(%arg0: i32, %arg1: i32) -> (i32, i32) {
    %c0_i32 = arith.constant 0 : i32
    %c0_i32_0 = arith.constant 0 : i32
    %c0_i32_1 = arith.constant 0 : i32
    return %c0_i32, %c0_i32_0 : i32, i32
  }
  func.func @transform_4(%arg0: i32, %arg1: i32) -> (i32, i32) {
    %c0_i32 = arith.constant 0 : i32
    %c0_i32_0 = arith.constant 0 : i32
    %c0_i32_1 = arith.constant 0 : i32
    return %c0_i32, %c0_i32_0 : i32, i32
  }
  func.func @transform_5(%arg0: i32, %arg1: i32) -> (i32, i32) {
    %c0_i32 = arith.constant 0 : i32
    %c0_i32_0 = arith.constant 0 : i32
    %c0_i32_1 = arith.constant 0 : i32
    return %c0_i32, %c0_i32_0 : i32, i32
  }
  func.func @transform_6(%arg0: i32, %arg1: i32) -> (i32, i32) {
    %c0_i32 = arith.constant 0 : i32
    %c0_i32_0 = arith.constant 0 : i32
    return %arg0, %c0_i32 : i32, i32
  }
}

</mosaic_0001>

<llo_original>
// kernel: gcn_forward.3
$region0: #{gcn_forward.3}
  #allocation0 [shape = 'u32[]', space=smem, size = 0x4, offset = 0x4, fixed_abs, tag = 'smem constant byte address 0x4 - core index']
  #allocation1 [shape = 'u32[72,128]{1,0:T(1,128)}', space=vmem, size = 0x9000, scoped, tag = 'internal scratch']
  #allocation2 [shape = 'f32[16,128]{1,0:T(8,128)}', space=vmem, size = 0x2000, scoped, tag = 'scratch operand']
  %s0 = inlined_call_operand.vmem [shape: f32[16,128], index: 0, kind: input, shape index: {}]
  %s1 = inlined_call_operand.vmem [shape: f32[128,128], index: 1, kind: input, shape index: {}]
  %s2 = inlined_call_operand.vmem [shape: f32[16,128], index: 2, kind: output, shape index: {}]
  %s3 = sld [smem:[#allocation0]]
  $region26: #{gcn_forward.3} parent=0
    _
  %s5 = ssub.s32 1, %s3
  %s6 = scalar_select 0, %s5, %s3
  // Predicated region
  $region2: #{gcn_forward.3} parent=0 // pred_check
    _
  $region3: #{gcn_forward.3} parent=0 // pred_check_branch
    %8 = sbr.rel (0) target = $region5
  $region4: #{gcn_forward.3} parent=0 // pred_region
    _
  $region5: #{gcn_forward.3} parent=0 // pred_fallthru
    _
  // Predicated region
  $region6: #{gcn_forward.3} parent=0 // pred_check
    _
  $region7: #{gcn_forward.3} parent=0 // pred_check_branch
    %10 = sbr.rel (0) target = $region9
  $region8: #{gcn_forward.3} parent=0 // pred_region
    _
  $region9: #{gcn_forward.3} parent=0 // pred_fallthru
    _
  %p11 = scmp.eq.s32.totalorder 0, 0
  // Predicated region
  $region10: #{gcn_forward.3} parent=0 // pred_check
    %p12 = pneg %p11
  $region11: #{gcn_forward.3} parent=0 // pred_check_branch
    %14 = sbr.rel (%p12) target = $region13
  $region12: #{gcn_forward.3} parent=0 // pred_region
    %15 = vst [vmem:[#allocation2] sm:$0xff] 0.0
    %16 = vst [vmem:[#allocation2 + $0x8] sm:$0xff] 0.0
  $region13: #{gcn_forward.3} parent=0 // pred_fallthru
    _
  %v17 = vld [vmem:[#allocation2] sm:$0xff]
  %v18 = vld [vmem:[#allocation2 + $0x8] sm:$0xff]
  %v19 = vld [vmem:[%s0] sm:$0xff]
  %v20 = vld [vmem:[%s0 + $0x8] sm:$0xff]
  %v21 = vld [vmem:[%s1] sm:$0xff]
  %v22 = vld [vmem:[%s1 + $0x8] sm:$0xff]
  %v23 = vld [vmem:[%s1 + $0x10] sm:$0xff]
  %v24 = vld [vmem:[%s1 + $0x18] sm:$0xff]
  %v25 = vld [vmem:[%s1 + $0x20] sm:$0xff]
  %v26 = vld [vmem:[%s1 + $0x28] sm:$0xff]
  %v27 = vld [vmem:[%s1 + $0x30] sm:$0xff]
  %v28 = vld [vmem:[%s1 + $0x38] sm:$0xff]
  %v29 = vld [vmem:[%s1 + $0x40] sm:$0xff]
  %v30 = vld [vmem:[%s1 + $0x48] sm:$0xff]
  %v31 = vld [vmem:[%s1 + $0x50] sm:$0xff]
  %v32 = vld [vmem:[%s1 + $0x58] sm:$0xff]
  %v33 = vld [vmem:[%s1 + $0x60] sm:$0xff]
  %v34 = vld [vmem:[%s1 + $0x68] sm:$0xff]
  %v35 = vld [vmem:[%s1 + $0x70] sm:$0xff]
  %v36 = vld [vmem:[%s1 + $0x78] sm:$0xff]
  %37 = vmatpush.msra.mxu0 %v36
  %38 = vmatpush.msra.mxu0 %v35
  %39 = vmatpush.msra.mxu0 %v34
  %40 = vmatpush.msra.mxu0 %v33
  %41 = vmatpush.msra.mxu0 %v32
  %42 = vmatpush.msra.mxu0 %v31
  %43 = vmatpush.msra.mxu0 %v30
  %44 = vmatpush.msra.mxu0 %v29
  %45 = vmatpush.msra.mxu0 %v28
  %46 = vmatpush.msra.mxu0 %v27
  %47 = vmatpush.msra.mxu0 %v26
  %48 = vmatpush.msra.mxu0 %v25
  %49 = vmatpush.msra.mxu0 %v24
  %50 = vmatpush.msra.mxu0 %v23
  %51 = vmatpush.msra.mxu0 %v22
  %52 = vmatpush.msra.mxu0 %v21
  %53 = vmatmul.f32.gmra.mxu0 %v19
  %v54 = vpop.f32.mrf.mxu0
  %v55 = vadd.f32 0.0, %v54
  %56 = vmatmul.f32.gmra.mxu0 %v20
  %v57 = vpop.f32.mrf.mxu0
  %v58 = vadd.f32 0.0, %v57
  %59 = vdwg.mxu0
  %v60 = vadd.f32 %v17, %v55
  %v61 = vadd.f32 %v18, %v58
  %62 = vst [vmem:[#allocation2] sm:$0xff] %v60
  %63 = vst [vmem:[#allocation2 + $0x8] sm:$0xff] %v61
  // Predicated region
  $region14: #{gcn_forward.3} parent=0 // pred_check
    %p64 = pneg %p11
  $region15: #{gcn_forward.3} parent=0 // pred_check_branch
    %66 = sbr.rel (%p64) target = $region17
  $region16: #{gcn_forward.3} parent=0 // pred_region
    %v67 = vld [vmem:[#allocation2] sm:$0xff]
    %v68 = vld [vmem:[#allocation2 + $0x8] sm:$0xff]
    %69 = vst [vmem:[%s2] sm:$0xff] %v67
    %70 = vst [vmem:[%s2 + $0x8] sm:$0xff] %v68
  $region17: #{gcn_forward.3} parent=0 // pred_fallthru
    _
  // Predicated region
  $region18: #{gcn_forward.3} parent=0 // pred_check
    _
  $region19: #{gcn_forward.3} parent=0 // pred_check_branch
    %72 = sbr.rel (0) target = $region21
  $region20: #{gcn_forward.3} parent=0 // pred_region
    _
  $region21: #{gcn_forward.3} parent=0 // pred_fallthru
    _
  // Predicated region
  $region22: #{gcn_forward.3} parent=0 // pred_check
    _
  $region23: #{gcn_forward.3} parent=0 // pred_check_branch
    %74 = sbr.rel (0) target = $region25
  $region24: #{gcn_forward.3} parent=0 // pred_region
    _
  $region25: #{gcn_forward.3} parent=0 // pred_fallthru
    _

// kernel: gcn_forward.5
$region0: #{gcn_forward.5}
  #allocation0 [shape = 'u32[]', space=smem, size = 0x4, offset = 0x4, fixed_abs, tag = 'smem constant byte address 0x4 - core index']
  #allocation1 [shape = 'u32[72,128]{1,0:T(1,128)}', space=vmem, size = 0x9000, scoped, tag = 'internal scratch']
  #allocation2 [shape = 'f32[128,128]{1,0:T(8,128)}', space=vmem, size = 0x10000, scoped, tag = 'scratch operand']
  %s0 = inlined_call_operand.vmem [shape: bf16[256,256], index: 0, kind: input, shape index: {}]
  %s1 = inlined_call_operand.vmem [shape: bf16[256,128], index: 1, kind: input, shape index: {}]
  %s2 = inlined_call_operand.vmem [shape: f32[1,64], index: 2, kind: input, shape index: {}]
  %s3 = inlined_call_operand.vmem [shape: f32[256,64], index: 3, kind: output, shape index: {}]
  %s4 = sld [smem:[#allocation0]]
  $region94: #{gcn_forward.5} parent=0
    _
  %s6 = ssub.s32 1, %s4
  %s7 = scalar_select 0, %s6, %s4
  $region1: #{gcn_forward.5} parent=0
    #allocation3 [shape = 'u8[65536]{0}', space=vmem, size = 0x10000, scoped, tag = 'input window, operand 0']
    loop: start=0, step=1, limit=6
    $region2: #{gcn_forward.5} parent=1 // loop_pre_header
      _
    $region3: #{gcn_forward.5} parent=1 // loop_header
      %s9 = sphi 0, %s13
      %p10 = scmp.ge.s32.totalorder %s9, 6
      %s16 = sphi 0, %s28
      %s17 = sphi 0, %s24
      %s18 = sphi 0, %s16
      %s19 = sphi 0, %s17
      %s20 = sphi 0, %s18
      %s21 = sphi 0, %s19
      %s33 = sphi 0, %s35
      %s36 = sphi 0, %s33
      %s37 = sphi 0, %s36
      %s53 = sphi 0, %s37
      %s57 = sphi 0, %s57
      %s59 = sphi 0, %s57
      %s60 = sphi 0, %s59
      %s74 = sphi 0, %s60
      %s78 = sphi 0, %s78
      %s80 = sphi 0, %s78
      %s81 = sphi 0, %s80
      %s95 = sphi 0, %s81
      %s101 = sphi 0, %s103
      %s104 = sphi 0, %s101
      %s105 = sphi 0, %s104
      %s121 = sphi 0, %s105
    $region4: #{gcn_forward.5} parent=1 // loop_header_branch
      %12 = sbr.rel (%p10) target = $region8
    $region5: #{gcn_forward.5} parent=1 // loop_body
      %s14 = ssub.s32 %s9, 1
      %s15 = ssub.s32 %s9, 2
      %s22 = sadd.s32 1, %s17
      %p23 = scmp.ge.s32.totalorder %s22, 2
      %s24 = scalar_select %p23, 0, %s22
      %s25 = sadd.s32 1, %s16
      %s26 = scalar_select %p23, %s25, %s16
      %p27 = scmp.ge.s32.totalorder %s26, 2
      %s28 = scalar_select %p27, 0, %s26
      %s29 = ssub.s32 %s16, %s28
      %s30 = ssub.s32 %s17, %s24
      %s31 = sor.u32 %s29, %s30
      %p32 = scmp.eq.s32.totalorder %s31, 0
      %s34 = sadd.s32 %s33, 1
      %s35 = scalar_select %p32, %s33, %s34
      %p38 = pneg %p32
      %p39 = scmp.eq.s32.totalorder %s9, 3
      %p40 = por %p38, %p39
      %p41 = scmp.ne.s32.totalorder %s33, %s36
      %p42 = scmp.eq.s32.totalorder %s9, 0
      %p43 = por %p41, %p42
      %p44 = scmp.ne.s32.totalorder %s33, %s36
      %p45 = scmp.eq.s32.totalorder %s14, 3
      %p46 = por %p44, %p45
      %p47 = scmp.ne.s32.totalorder %s36, %s37
      %p48 = scmp.eq.s32.totalorder %s14, 0
      %p49 = por %p47, %p48
      %p50 = scmp.ne.s32.totalorder %s36, %s37
      %p51 = scmp.eq.s32.totalorder %s15, 3
      %p52 = por %p50, %p51
      %p54 = scmp.ne.s32.totalorder %s37, %s53
      %p55 = scmp.eq.s32.totalorder %s15, 0
      %p56 = por %p54, %p55
      %s58 = sadd.s32 %s57, 1
      %p61 = scmp.eq.s32.totalorder %s9, 3
      %p62 = scmp.ne.s32.totalorder %s57, %s59
      %p63 = scmp.eq.s32.totalorder %s9, 0
      %p64 = por %p62, %p63
      %p65 = scmp.ne.s32.totalorder %s57, %s59
      %p66 = scmp.eq.s32.totalorder %s14, 3
      %p67 = por %p65, %p66
      %p68 = scmp.ne.s32.totalorder %s59, %s60
      %p69 = scmp.eq.s32.totalorder %s14, 0
      %p70 = por %p68, %p69
      %p71 = scmp.ne.s32.totalorder %s59, %s60
      %p72 = scmp.eq.s32.totalorder %s15, 3
      %p73 = por %p71, %p72
      %p75 = scmp.ne.s32.totalorder %s60, %s74
      %p76 = scmp.eq.s32.totalorder %s15, 0
      %p77 = por %p75, %p76
      %s79 = sadd.s32 %s78, 1
      %p82 = scmp.eq.s32.totalorder %s9, 3
      %p83 = scmp.ne.s32.totalorder %s78, %s80
      %p84 = scmp.eq.s32.totalorder %s9, 0
      %p85 = por %p83, %p84
      %p86 = scmp.ne.s32.totalorder %s78, %s80
      %p87 = scmp.eq.s32.totalorder %s14, 3
      %p88 = por %p86, %p87
      %p89 = scmp.ne.s32.totalorder %s80, %s81
      %p90 = scmp.eq.s32.totalorder %s14, 0
      %p91 = por %p89, %p90
      %p92 = scmp.ne.s32.totalorder %s80, %s81
      %p93 = scmp.eq.s32.totalorder %s15, 3
      %p94 = por %p92, %p93
      %p96 = scmp.ne.s32.totalorder %s81, %s95
      %p97 = scmp.eq.s32.totalorder %s15, 0
      %p98 = por %p96, %p97
      %s99 = ssub.s32 %s16, %s28
      %p100 = scmp.eq.s32.totalorder %s99, 0
      %s102 = sadd.s32 %s101, 1
      %s103 = scalar_select %p100, %s101, %s102
      %p106 = pneg %p100
      %p107 = scmp.eq.s32.totalorder %s9, 3
      %p108 = por %p106, %p107
      %p109 = scmp.ne.s32.totalorder %s101, %s104
      %p110 = scmp.eq.s32.totalorder %s9, 0
      %p111 = por %p109, %p110
      %p112 = scmp.ne.s32.totalorder %s101, %s104
      %p113 = scmp.eq.s32.totalorder %s14, 3
      %p114 = por %p112, %p113
      %p115 = scmp.ne.s32.totalorder %s104, %s105
      %p116 = scmp.eq.s32.totalorder %s14, 0
      %p117 = por %p115, %p116
      %p118 = scmp.ne.s32.totalorder %s104, %s105
      %p119 = scmp.eq.s32.totalorder %s15, 3
      %p120 = por %p118, %p119
      %p122 = scmp.ne.s32.totalorder %s105, %s121
      %p123 = scmp.eq.s32.totalorder %s15, 0
      %p124 = por %p122, %p123
      %p125 = scmp.le.s32.totalorder 1, %s9
      %p126 = scmp.lt.s32.totalorder %s9, 5
      %p127 = pnand %p125, %p126
      %p128 = pneg %p127
      // Predicated region
      $region9: #{gcn_forward.5} parent=5 // pred_check
        _
      $region10: #{gcn_forward.5} parent=5 // pred_check_branch
        %130 = sbr.rel (%p127) target = $region12
      $region11: #{gcn_forward.5} parent=5 // pred_region
        %s131 = ssub.s32 %s9, 1
        // Predicated region
        $region13: #{gcn_forward.5} parent=11 // pred_check
          %p132 = pneg %p70
        $region14: #{gcn_forward.5} parent=11 // pred_check_branch
          %134 = sbr.rel (%p132) target = $region16
        $region15: #{gcn_forward.5} parent=11 // pred_region
          _
        $region16: #{gcn_forward.5} parent=11 // pred_fallthru
          _
        // Predicated region
        $region17: #{gcn_forward.5} parent=11 // pred_check
          %p135 = pneg %p91
        $region18: #{gcn_forward.5} parent=11 // pred_check_branch
          %137 = sbr.rel (%p135) target = $region20
        $region19: #{gcn_forward.5} parent=11 // pred_region
          _
        $region20: #{gcn_forward.5} parent=11 // pred_fallthru
          _
      $region12: #{gcn_forward.5} parent=5 // pred_fallthru
        _
      %p138 = scmp.lt.s32.totalorder %s9, 4
      // Predicated region
      $region21: #{gcn_forward.5} parent=5 // pred_check
        %p139 = pneg %p138
      $region22: #{gcn_forward.5} parent=5 // pred_check_branch
        %141 = sbr.rel (%p139) target = $region24
      $region23: #{gcn_forward.5} parent=5 // pred_region
        // Predicated region
        $region25: #{gcn_forward.5} parent=23 // pred_check
          %p142 = pneg %p43
        $region26: #{gcn_forward.5} parent=23 // pred_check_branch
          %144 = sbr.rel (%p142) target = $region28
        $region27: #{gcn_forward.5} parent=23 // pred_region
          %s145 = sand.u32 %s33, 1
          %s146 = sand.u32 %s33, 1
          %s147 = smul.addr %s146, 64
          %s148 = scalar_lea.vmem [#allocation3], %s147
          %s149 = smul.u32 16, %s16
          %s150 = smul.addr %s149, 2
          %s151 = sadd.s32 %s17, %s150
          %s152 = smul.addr %s151, 4
          %s153 = scalar_lea.vmem %s0, %s152
          // Predicated region
          $region29: #{gcn_forward.5} parent=27 // pred_check
            _
          $region30: #{gcn_forward.5} parent=27 // pred_check_branch
            %155 = sbr.rel (0) target = $region32
          $region31: #{gcn_forward.5} parent=27 // pred_region
            // Predicated region
            $region33: #{gcn_forward.5} parent=31 // pred_check
              _
            $region34: #{gcn_forward.5} parent=31 // pred_check_branch
              %157 = sbr.rel target = $region36
            $region35: #{gcn_forward.5} parent=31 // pred_region
              // Predicated region
              $region48: #{gcn_forward.5} parent=35 // pred_check
                _
              $region49: #{gcn_forward.5} parent=35 // pred_check_branch
                %203 = sbr.rel (0) target = $region51
              $region50: #{gcn_forward.5} parent=35 // pred_region
                loop: start=0, step=1, limit=1
                $region52: #{gcn_forward.5} parent=50 // loop_pre_header
                  _
                $region53: #{gcn_forward.5} parent=50 // loop_header
                  %s205 = sphi 0, %s209
                  %p206 = scmp.ge.s32.totalorder %s205, 1
                  %s210 = sphi %s153, %s153
                  %s211 = sphi %s148, %s148
                $region54: #{gcn_forward.5} parent=50 // loop_header_branch
                  %208 = sbr.rel (%p206) target = $region58
                $region55: #{gcn_forward.5} parent=50 // loop_body
                  _
                $region56: #{gcn_forward.5} parent=50 // loop_footer
                  %s209 = sadd.s32 1, %s205
                $region57: #{gcn_forward.5} parent=50 // loop_footer_branch
                  %204 = sbr.rel target = $region53
                $region58: #{gcn_forward.5} parent=50 // loop_exit
                  _
                %s213 = ssub.s32 16, 1
                loop: start=0, step=1, limit=1
                $region59: #{gcn_forward.5} parent=50 // loop_pre_header
                  _
                $region60: #{gcn_forward.5} parent=50 // loop_header
                  %s215 = sphi 0, %s219
                  %p216 = scmp.ge.s32.totalorder %s215, 1
                  %s220 = sphi %s153, %s153
                  %s221 = sphi %s148, %s148
                $region61: #{gcn_forward.5} parent=50 // loop_header_branch
                  %218 = sbr.rel (%p216) target = $region65
                $region62: #{gcn_forward.5} parent=50 // loop_body
                  %v222 = vld [vmem:[%s220] sm:%s213]
                  %223 = vst [vmem:[%s221] sm:%s213] %v222
                  %v224 = vld [vmem:[%s220 + $0x8] sm:%s213]
                  %225 = vst [vmem:[%s221 + $0x4] sm:%s213] %v224
                  %v226 = vld [vmem:[%s220 + $0x10] sm:%s213]
                  %227 = vst [vmem:[%s221 + $0x8] sm:%s213] %v226
                  %v228 = vld [vmem:[%s220 + $0x18] sm:%s213]
                  %229 = vst [vmem:[%s221 + $0xc] sm:%s213] %v228
                  %v230 = vld [vmem:[%s220 + $0x20] sm:%s213]
                  %231 = vst [vmem:[%s221 + $0x10] sm:%s213] %v230
                  %v232 = vld [vmem:[%s220 + $0x28] sm:%s213]
                  %233 = vst [vmem:[%s221 + $0x14] sm:%s213] %v232
                  %v234 = vld [vmem:[%s220 + $0x30] sm:%s213]
                  %235 = vst [vmem:[%s221 + $0x18] sm:%s213] %v234
                  %v236 = vld [vmem:[%s220 + $0x38] sm:%s213]
                  %237 = vst [vmem:[%s221 + $0x1c] sm:%s213] %v236
                  %v238 = vld [vmem:[%s220 + $0x40] sm:%s213]
                  %239 = vst [vmem:[%s221 + $0x20] sm:%s213] %v238
                  %v240 = vld [vmem:[%s220 + $0x48] sm:%s213]
                  %241 = vst [vmem:[%s221 + $0x24] sm:%s213] %v240
                  %v242 = vld [vmem:[%s220 + $0x50] sm:%s213]
                  %243 = vst [vmem:[%s221 + $0x28] sm:%s213] %v242
                  %v244 = vld [vmem:[%s220 + $0x58] sm:%s213]
                  %245 = vst [vmem:[%s221 + $0x2c] sm:%s213] %v244
                  %v246 = vld [vmem:[%s220 + $0x60] sm:%s213]
                  %247 = vst [vmem:[%s221 + $0x30] sm:%s213] %v246
                  %v248 = vld [vmem:[%s220 + $0x68] sm:%s213]
                  %249 = vst [vmem:[%s221 + $0x34] sm:%s213] %v248
                  %v250 = vld [vmem:[%s220 + $0x70] sm:%s213]
                  %251 = vst [vmem:[%s221 + $0x38] sm:%s213] %v250
                  %v252 = vld [vmem:[%s220 + $0x78] sm:%s213]
                  %253 = vst [vmem:[%s221 + $0x3c] sm:%s213] %v252
                $region63: #{gcn_forward.5} parent=50 // loop_footer
                  %s219 = sadd.s32 1, %s215
                $region64: #{gcn_forward.5} parent=50 // loop_footer_branch
                  %214 = sbr.rel target = $region60
                $region65: #{gcn_forward.5} parent=50 // loop_exit
                  _
              $region51: #{gcn_forward.5} parent=35 // pred_fallthru
                _
            $region36: #{gcn_forward.5} parent=31 // pred_fallthru
              _
            // Predicated region
            $region37: #{gcn_forward.5} parent=31 // pred_check
              _
            $region38: #{gcn_forward.5} parent=31 // pred_check_branch
              %159 = sbr.rel (0) target = $region40
            $region39: #{gcn_forward.5} parent=31 // pred_region
              %s161 = ssub.s32 16, 1
              loop: start=0, step=1, limit=1
              $region41: #{gcn_forward.5} parent=39 // loop_pre_header
                _
              $region42: #{gcn_forward.5} parent=39 // loop_header
                %s163 = sphi 0, %s167
                %p164 = scmp.ge.s32.totalorder %s163, 1
                %s168 = sphi %s153, %s153
                %s169 = sphi %s148, %s148
              $region43: #{gcn_forward.5} parent=39 // loop_header_branch
                %166 = sbr.rel (%p164) target = $region47
              $region44: #{gcn_forward.5} parent=39 // loop_body
                %v170 = vld [vmem:[%s168] sm:%s161]
                %171 = vst [vmem:[%s169] sm:%s161] %v170
                %v172 = vld [vmem:[%s168 + $0x8] sm:%s161]
                %173 = vst [vmem:[%s169 + $0x4] sm:%s161] %v172
                %v174 = vld [vmem:[%s168 + $0x10] sm:%s161]
                %175 = vst [vmem:[%s169 + $0x8] sm:%s161] %v174
                %v176 = vld [vmem:[%s168 + $0x18] sm:%s161]
                %177 = vst [vmem:[%s169 + $0xc] sm:%s161] %v176
                %v178 = vld [vmem:[%s168 + $0x20] sm:%s161]
                %179 = vst [vmem:[%s169 + $0x10] sm:%s161] %v178
                %v180 = vld [vmem:[%s168 + $0x28] sm:%s161]
                %181 = vst [vmem:[%s169 + $0x14] sm:%s161] %v180
                %v182 = vld [vmem:[%s168 + $0x30] sm:%s161]
                %183 = vst [vmem:[%s169 + $0x18] sm:%s161] %v182
                %v184 = vld [vmem:[%s168 + $0x38] sm:%s161]
                %185 = vst [vmem:[%s169 + $0x1c] sm:%s161] %v184
                %v186 = vld [vmem:[%s168 + $0x40] sm:%s161]
                %187 = vst [vmem:[%s169 + $0x20] sm:%s161] %v186
                %v188 = vld [vmem:[%s168 + $0x48] sm:%s161]
                %189 = vst [vmem:[%s169 + $0x24] sm:%s161] %v188
                %v190 = vld [vmem:[%s168 + $0x50] sm:%s161]
                %191 = vst [vmem:[%s169 + $0x28] sm:%s161] %v190
                %v192 = vld [vmem:[%s168 + $0x58] sm:%s161]
                %193 = vst [vmem:[%s169 + $0x2c] sm:%s161] %v192
                %v194 = vld [vmem:[%s168 + $0x60] sm:%s161]
                %195 = vst [vmem:[%s169 + $0x30] sm:%s161] %v194
                %v196 = vld [vmem:[%s168 + $0x68] sm:%s161]
                %197 = vst [vmem:[%s169 + $0x34] sm:%s161] %v196
                %v198 = vld [vmem:[%s168 + $0x70] sm:%s161]
                %199 = vst [vmem:[%s169 + $0x38] sm:%s161] %v198
                %v200 = vld [vmem:[%s168 + $0x78] sm:%s161]
                %201 = vst [vmem:[%s169 + $0x3c] sm:%s161] %v200
              $region45: #{gcn_forward.5} parent=39 // loop_footer
                %s167 = sadd.s32 1, %s163
              $region46: #{gcn_forward.5} parent=39 // loop_footer_branch
                %162 = sbr.rel target = $region42
              $region47: #{gcn_forward.5} parent=39 // loop_exit
                _
            $region40: #{gcn_forward.5} parent=31 // pred_fallthru
              _
          $region32: #{gcn_forward.5} parent=27 // pred_fallthru
            _
          %254 = vnop
        $region28: #{gcn_forward.5} parent=23 // pred_fallthru
          _
      $region24: #{gcn_forward.5} parent=5 // pred_fallthru
        _
      %p255 = scmp.le.s32.totalorder 1, %s9
      %p256 = scmp.lt.s32.totalorder %s9, 5
      %p257 = pnand %p255, %p256
      %p258 = pneg %p257
      // Predicated region
      $region66: #{gcn_forward.5} parent=5 // pred_check
        _
      $region67: #{gcn_forward.5} parent=5 // pred_check_branch
        %260 = sbr.rel (%p257) target = $region69
      $region68: #{gcn_forward.5} parent=5 // pred_region
        %s261 = ssub.s32 %s9, 1
        %s262 = sand.u32 %s36, 1
        %s263 = sand.u32 %s36, 1
        %s264 = smul.addr %s263, 64
        %s265 = scalar_lea.vmem [#allocation3], %s264
        // Predicated region
        $region70: #{gcn_forward.5} parent=68 // pred_check
          %p266 = pneg %p49
        $region71: #{gcn_forward.5} parent=68 // pred_check_branch
          %268 = sbr.rel (%p266) target = $region73
        $region72: #{gcn_forward.5} parent=68 // pred_region
          _
        $region73: #{gcn_forward.5} parent=68 // pred_fallthru
          _
        %s269 = sand.u32 %s36, 1
        %s270 = sand.u32 %s36, 1
        %s271 = smul.addr %s270, 64
        %s272 = scalar_lea.vmem [#allocation3], %s271
        %p273 = pneg %p49
        %p274 = pneg %p46
        %p275 = pneg %p70
        %p276 = pneg %p67
        %p277 = pneg %p91
        %p278 = pneg %p88
        %p279 = pneg %p117
        %p280 = pneg %p114
        %s281 = smul.u32 16, %s18
        %p282 = scmp.lt.s32.totalorder %s281, 31
        %s283 = scalar_select %p282, %s281, 31
        %s284 = smul.addr %s283, 8
        %s285 = scalar_lea.vmem %s3, %s284
        %s286 = smul.u32 16, %s18
        %s287 = smul.u32 16, %s18
        %p288 = scmp.lt.s32.totalorder %s287, 31
        %s289 = scalar_select %p288, %s287, 31
        %s290 = smul.addr %s289, 8
        %s291 = scalar_lea.vmem %s3, %s290
        %s292 = smul.u32 16, %s18
        %p293 = scmp.eq.s32.totalorder %s19, 0
        // Predicated region
        $region74: #{gcn_forward.5} parent=68 // pred_check
          %p294 = pneg %p293
        $region75: #{gcn_forward.5} parent=68 // pred_check_branch
          %296 = sbr.rel (%p294) target = $region77
        $region76: #{gcn_forward.5} parent=68 // pred_region
          %297 = vst [vmem:[#allocation2] sm:$0xff] 0.0
          %298 = vst [vmem:[#allocation2 + $0x8] sm:$0xff] 0.0
          %299 = vst [vmem:[#allocation2 + $0x10] sm:$0xff] 0.0
          %300 = vst [vmem:[#allocation2 + $0x18] sm:$0xff] 0.0
          %301 = vst [vmem:[#allocation2 + $0x20] sm:$0xff] 0.0
          %302 = vst [vmem:[#allocation2 + $0x28] sm:$0xff] 0.0
          %303 = vst [vmem:[#allocation2 + $0x30] sm:$0xff] 0.0
          %304 = vst [vmem:[#allocation2 + $0x38] sm:$0xff] 0.0
          %305 = vst [vmem:[#allocation2 + $0x40] sm:$0xff] 0.0
          %306 = vst [vmem:[#allocation2 + $0x48] sm:$0xff] 0.0
          %307 = vst [vmem:[#allocation2 + $0x50] sm:$0xff] 0.0
          %308 = vst [vmem:[#allocation2 + $0x58] sm:$0xff] 0.0
          %309 = vst [vmem:[#allocation2 + $0x60] sm:$0xff] 0.0
          %310 = vst [vmem:[#allocation2 + $0x68] sm:$0xff] 0.0
          %311 = vst [vmem:[#allocation2 + $0x70] sm:$0xff] 0.0
          %312 = vst [vmem:[#allocation2 + $0x78] sm:$0xff] 0.0
        $region77: #{gcn_forward.5} parent=68 // pred_fallthru
          _
        %s313 = smul.u32 %s19, 128
        %v314 = vld [vmem:[#allocation2] sm:$0xff]
        %v315 = vld [vmem:[#allocation2 + $0x8] sm:$0xff]
        %v316 = vld [vmem:[#allocation2 + $0x10] sm:$0xff]
        %v317 = vld [vmem:[#allocation2 + $0x18] sm:$0xff]
        %v318 = vld [vmem:[#allocation2 + $0x20] sm:$0xff]
        %v319 = vld [vmem:[#allocation2 + $0x28] sm:$0xff]
        %v320 = vld [vmem:[#allocation2 + $0x30] sm:$0xff]
        %v321 = vld [vmem:[#allocation2 + $0x38] sm:$0xff]
        %v322 = vld [vmem:[#allocation2 + $0x40] sm:$0xff]
        %v323 = vld [vmem:[#allocation2 + $0x48] sm:$0xff]
        %v324 = vld [vmem:[#allocation2 + $0x50] sm:$0xff]
        %v325 = vld [vmem:[#allocation2 + $0x58] sm:$0xff]
        %v326 = vld [vmem:[#allocation2 + $0x60] sm:$0xff]
        %v327 = vld [vmem:[#allocation2 + $0x68] sm:$0xff]
        %v328 = vld [vmem:[#allocation2 + $0x70] sm:$0xff]
        %v329 = vld [vmem:[#allocation2 + $0x78] sm:$0xff]
        %v330 = vld [vmem:[%s265] sm:$0xf]
        %v331 = vld [vmem:[%s265 + $0x4] sm:$0xf]
        %v332 = vld [vmem:[%s265 + $0x8] sm:$0xf]
        %v333 = vld [vmem:[%s265 + $0xc] sm:$0xf]
        %v334 = vld [vmem:[%s265 + $0x10] sm:$0xf]
        %v335 = vld [vmem:[%s265 + $0x14] sm:$0xf]
        %v336 = vld [vmem:[%s265 + $0x18] sm:$0xf]
        %v337 = vld [vmem:[%s265 + $0x1c] sm:$0xf]
        %v338 = vld [vmem:[%s265 + $0x20] sm:$0xf]
        %v339 = vld [vmem:[%s265 + $0x24] sm:$0xf]
        %v340 = vld [vmem:[%s265 + $0x28] sm:$0xf]
        %v341 = vld [vmem:[%s265 + $0x2c] sm:$0xf]
        %v342 = vld [vmem:[%s265 + $0x30] sm:$0xf]
        %v343 = vld [vmem:[%s265 + $0x34] sm:$0xf]
        %v344 = vld [vmem:[%s265 + $0x38] sm:$0xf]
        %v345 = vld [vmem:[%s265 + $0x3c] sm:$0xf]
        %s346 = sshra.s32 %s313, 3
        %s347 = sand.u32 %s313, 7
        %s348 = smul.addr %s346, 4
        %s349 = scalar_lea.vmem %s1, %s348
        %v350 = vld [vmem:[%s349] sm:$0xf]
        %v351 = vld [vmem:[%s349 + $0x4] sm:$0xf]
        %v352 = vld [vmem:[%s349 + $0x8] sm:$0xf]
        %v353 = vld [vmem:[%s349 + $0xc] sm:$0xf]
        %v354 = vld [vmem:[%s349 + $0x10] sm:$0xf]
        %v355 = vld [vmem:[%s349 + $0x14] sm:$0xf]
        %v356 = vld [vmem:[%s349 + $0x18] sm:$0xf]
        %v357 = vld [vmem:[%s349 + $0x1c] sm:$0xf]
        %v358 = vld [vmem:[%s349 + $0x20] sm:$0xf]
        %v359 = vld [vmem:[%s349 + $0x24] sm:$0xf]
        %v360 = vld [vmem:[%s349 + $0x28] sm:$0xf]
        %v361 = vld [vmem:[%s349 + $0x2c] sm:$0xf]
        %v362 = vld [vmem:[%s349 + $0x30] sm:$0xf]
        %v363 = vld [vmem:[%s349 + $0x34] sm:$0xf]
        %v364 = vld [vmem:[%s349 + $0x38] sm:$0xf]
        %v365 = vld [vmem:[%s349 + $0x3c] sm:$0xf]
        %v382 = vunpack.c.l.b16 %v330
        %v383 = vunpack.c.l.b16 %v331
        %v384 = vunpack.c.l.b16 %v332
        %v385 = vunpack.c.l.b16 %v333
        %v386 = vunpack.c.l.b16 %v334
        %v387 = vunpack.c.l.b16 %v335
        %v388 = vunpack.c.l.b16 %v336
        %v389 = vunpack.c.l.b16 %v337
        %v390 = vunpack.c.l.b16 %v338
        %v391 = vunpack.c.l.b16 %v339
        %v392 = vunpack.c.l.b16 %v340
        %v393 = vunpack.c.l.b16 %v341
        %v394 = vunpack.c.l.b16 %v342
        %v395 = vunpack.c.l.b16 %v343
        %v396 = vunpack.c.l.b16 %v344
        %v397 = vunpack.c.l.b16 %v345
        %v398 = vpack.c.b16 %v383, %v382
        %v399 = vpack.c.b16 %v385, %v384
        %v400 = vpack.c.b16 %v387, %v386
        %v401 = vpack.c.b16 %v389, %v388
        %v402 = vpack.c.b16 %v391, %v390
        %v403 = vpack.c.b16 %v393, %v392
        %v404 = vpack.c.b16 %v395, %v394
        %v405 = vpack.c.b16 %v397, %v396
        %v430 = vunpack.c.l.b16 %v350
        %v431 = vunpack.c.l.b16 %v351
        %v432 = vunpack.c.l.b16 %v352
        %v433 = vunpack.c.l.b16 %v353
        %v434 = vunpack.c.l.b16 %v354
        %v435 = vunpack.c.l.b16 %v355
        %v436 = vunpack.c.l.b16 %v356
        %v437 = vunpack.c.l.b16 %v357
        %v438 = vunpack.c.l.b16 %v358
        %v439 = vunpack.c.l.b16 %v359
        %v440 = vunpack.c.l.b16 %v360
        %v441 = vunpack.c.l.b16 %v361
        %v442 = vunpack.c.l.b16 %v362
        %v443 = vunpack.c.l.b16 %v363
        %v444 = vunpack.c.l.b16 %v364
        %v445 = vunpack.c.l.b16 %v365
        %v446 = vpack.c.b16 %v431, %v430
        %v447 = vpack.c.b16 %v433, %v432
        %v448 = vpack.c.b16 %v435, %v434
        %v449 = vpack.c.b16 %v437, %v436
        %v450 = vpack.c.b16 %v439, %v438
        %v451 = vpack.c.b16 %v441, %v440
        %v452 = vpack.c.b16 %v443, %v442
        %v453 = vpack.c.b16 %v445, %v444
        %462 = vmatpush.bf16.msra.mxu0 %v453
        %463 = vmatpush.bf16.msra.mxu0 %v452
        %464 = vmatpush.bf16.msra.mxu0 %v451
        %465 = vmatpush.bf16.msra.mxu0 %v450
        %466 = vmatpush.bf16.msra.mxu0 %v449
        %467 = vmatpush.bf16.msra.mxu0 %v448
        %468 = vmatpush.bf16.msra.mxu0 %v447
        %469 = vmatpush.bf16.msra.mxu0 %v446
        %470 = vmatmul.bf16.gmra.mxu0 %v398
        %v471 = vpop.f32.mrf.mxu0
        %v472 = vadd.f32 0.0, %v471
        %v473 = vpop.f32.mrf.mxu0
        %v474 = vadd.f32 0.0, %v473
        %475 = vmatmul.bf16.gmra.mxu0 %v399
        %v476 = vpop.f32.mrf.mxu0
        %v477 = vadd.f32 0.0, %v476
        %v478 = vpop.f32.mrf.mxu0
        %v479 = vadd.f32 0.0, %v478
        %480 = vmatmul.bf16.gmra.mxu0 %v400
        %v481 = vpop.f32.mrf.mxu0
        %v482 = vadd.f32 0.0, %v481
        %v483 = vpop.f32.mrf.mxu0
        %v484 = vadd.f32 0.0, %v483
        %485 = vmatmul.bf16.gmra.mxu0 %v401
        %v486 = vpop.f32.mrf.mxu0
        %v487 = vadd.f32 0.0, %v486
        %v488 = vpop.f32.mrf.mxu0
        %v489 = vadd.f32 0.0, %v488
        %490 = vmatmul.bf16.gmra.mxu0 %v402
        %v491 = vpop.f32.mrf.mxu0
        %v492 = vadd.f32 0.0, %v491
        %v493 = vpop.f32.mrf.mxu0
        %v494 = vadd.f32 0.0, %v493
        %495 = vmatmul.bf16.gmra.mxu0 %v403
        %v496 = vpop.f32.mrf.mxu0
        %v497 = vadd.f32 0.0, %v496
        %v498 = vpop.f32.mrf.mxu0
        %v499 = vadd.f32 0.0, %v498
        %500 = vmatmul.bf16.gmra.mxu0 %v404
        %v501 = vpop.f32.mrf.mxu0
        %v502 = vadd.f32 0.0, %v501
        %v503 = vpop.f32.mrf.mxu0
        %v504 = vadd.f32 0.0, %v503
        %505 = vmatmul.bf16.gmra.mxu0 %v405
        %v506 = vpop.f32.mrf.mxu0
        %v507 = vadd.f32 0.0, %v506
        %v508 = vpop.f32.mrf.mxu0
        %v509 = vadd.f32 0.0, %v508
        %510 = vdwg.mxu0
        %v511 = vadd.f32 %v314, %v472
        %v512 = vadd.f32 %v315, %v474
        %v513 = vadd.f32 %v316, %v477
        %v514 = vadd.f32 %v317, %v479
        %v515 = vadd.f32 %v318, %v482
        %v516 = vadd.f32 %v319, %v484
        %v517 = vadd.f32 %v320, %v487
        %v518 = vadd.f32 %v321, %v489
        %v519 = vadd.f32 %v322, %v492
        %v520 = vadd.f32 %v323, %v494
        %v521 = vadd.f32 %v324, %v497
        %v522 = vadd.f32 %v325, %v499
        %v523 = vadd.f32 %v326, %v502
        %v524 = vadd.f32 %v327, %v504
        %v525 = vadd.f32 %v328, %v507
        %v526 = vadd.f32 %v329, %v509
        %527 = vst [vmem:[#allocation2] sm:$0xff] %v511
        %528 = vst [vmem:[#allocation2 + $0x8] sm:$0xff] %v512
        %529 = vst [vmem:[#allocation2 + $0x10] sm:$0xff] %v513
        %530 = vst [vmem:[#allocation2 + $0x18] sm:$0xff] %v514
        %531 = vst [vmem:[#allocation2 + $0x20] sm:$0xff] %v515
        %532 = vst [vmem:[#allocation2 + $0x28] sm:$0xff] %v516
        %533 = vst [vmem:[#allocation2 + $0x30] sm:$0xff] %v517
        %534 = vst [vmem:[#allocation2 + $0x38] sm:$0xff] %v518
        %535 = vst [vmem:[#allocation2 + $0x40] sm:$0xff] %v519
        %536 = vst [vmem:[#allocation2 + $0x48] sm:$0xff] %v520
        %537 = vst [vmem:[#allocation2 + $0x50] sm:$0xff] %v521
        %538 = vst [vmem:[#allocation2 + $0x58] sm:$0xff] %v522
        %539 = vst [vmem:[#allocation2 + $0x60] sm:$0xff] %v523
        %540 = vst [vmem:[#allocation2 + $0x68] sm:$0xff] %v524
        %541 = vst [vmem:[#allocation2 + $0x70] sm:$0xff] %v525
        %542 = vst [vmem:[#allocation2 + $0x78] sm:$0xff] %v526
        %p543 = scmp.eq.s32.totalorder %s19, 1
        // Predicated region
        $region78: #{gcn_forward.5} parent=68 // pred_check
          %p544 = pneg %p543
        $region79: #{gcn_forward.5} parent=68 // pred_check_branch
          %546 = sbr.rel (%p544) target = $region81
        $region80: #{gcn_forward.5} parent=68 // pred_region
          %s547 = smul.u32 %s18, 128
          %s548 = sshra.s32 %s547, 3
          %s549 = sand.u32 %s547, 7
          %s550 = smul.addr %s548, 4
          %s551 = scalar_lea.vmem %s1, %s550
          %v552 = vld [vmem:[%s551] sm:$0xf]
          %v553 = vld [vmem:[%s551 + $0x4] sm:$0xf]
          %v554 = vld [vmem:[%s551 + $0x8] sm:$0xf]
          %v555 = vld [vmem:[%s551 + $0xc] sm:$0xf]
          %v556 = vld [vmem:[%s551 + $0x10] sm:$0xf]
          %v557 = vld [vmem:[%s551 + $0x14] sm:$0xf]
          %v558 = vld [vmem:[%s551 + $0x18] sm:$0xf]
          %v559 = vld [vmem:[%s551 + $0x1c] sm:$0xf]
          %v560 = vld [vmem:[%s551 + $0x20] sm:$0xf]
          %v561 = vld [vmem:[%s551 + $0x24] sm:$0xf]
          %v562 = vld [vmem:[%s551 + $0x28] sm:$0xf]
          %v563 = vld [vmem:[%s551 + $0x2c] sm:$0xf]
          %v564 = vld [vmem:[%s551 + $0x30] sm:$0xf]
          %v565 = vld [vmem:[%s551 + $0x34] sm:$0xf]
          %v566 = vld [vmem:[%s551 + $0x38] sm:$0xf]
          %v567 = vld [vmem:[%s551 + $0x3c] sm:$0xf]
          %v568 = vunpack.c.l.bf16 %v552
          %v569 = vunpack.c.l.bf16 %v553
          %v570 = vunpack.c.l.bf16 %v554
          %v571 = vunpack.c.l.bf16 %v555
          %v572 = vunpack.c.l.bf16 %v556
          %v573 = vunpack.c.l.bf16 %v557
          %v574 = vunpack.c.l.bf16 %v558
          %v575 = vunpack.c.l.bf16 %v559
          %v576 = vunpack.c.l.bf16 %v560
          %v577 = vunpack.c.l.bf16 %v561
          %v578 = vunpack.c.l.bf16 %v562
          %v579 = vunpack.c.l.bf16 %v563
          %v580 = vunpack.c.l.bf16 %v564
          %v581 = vunpack.c.l.bf16 %v565
          %v582 = vunpack.c.l.bf16 %v566
          %v583 = vunpack.c.l.bf16 %v567
          %v584 = vld [vmem:[#allocation2] sm:$0xff]
          %v585 = vld [vmem:[#allocation2 + $0x8] sm:$0xff]
          %v586 = vld [vmem:[#allocation2 + $0x10] sm:$0xff]
          %v587 = vld [vmem:[#allocation2 + $0x18] sm:$0xff]
          %v588 = vld [vmem:[#allocation2 + $0x20] sm:$0xff]
          %v589 = vld [vmem:[#allocation2 + $0x28] sm:$0xff]
          %v590 = vld [vmem:[#allocation2 + $0x30] sm:$0xff]
          %v591 = vld [vmem:[#allocation2 + $0x38] sm:$0xff]
          %v592 = vld [vmem:[#allocation2 + $0x40] sm:$0xff]
          %v593 = vld [vmem:[#allocation2 + $0x48] sm:$0xff]
          %v594 = vld [vmem:[#allocation2 + $0x50] sm:$0xff]
          %v595 = vld [vmem:[#allocation2 + $0x58] sm:$0xff]
          %v596 = vld [vmem:[#allocation2 + $0x60] sm:$0xff]
          %v597 = vld [vmem:[#allocation2 + $0x68] sm:$0xff]
          %v598 = vld [vmem:[#allocation2 + $0x70] sm:$0xff]
          %v599 = vld [vmem:[#allocation2 + $0x78] sm:$0xff]
          %616 = vrot.lane.b32.xlu0 %v568, 64
          %v617 = vpop.permute.xlu0 %616
          %618 = vrot.lane.b32.xlu0 %v569, 64
          %v619 = vpop.permute.xlu0 %618
          %620 = vrot.lane.b32.xlu0 %v570, 64
          %v621 = vpop.permute.xlu0 %620
          %622 = vrot.lane.b32.xlu0 %v571, 64
          %v623 = vpop.permute.xlu0 %622
          %624 = vrot.lane.b32.xlu0 %v572, 64
          %v625 = vpop.permute.xlu0 %624
          %626 = vrot.lane.b32.xlu0 %v573, 64
          %v627 = vpop.permute.xlu0 %626
          %628 = vrot.lane.b32.xlu0 %v574, 64
          %v629 = vpop.permute.xlu0 %628
          %630 = vrot.lane.b32.xlu0 %v575, 64
          %v631 = vpop.permute.xlu0 %630
          %632 = vrot.lane.b32.xlu0 %v576, 64
          %v633 = vpop.permute.xlu0 %632
          %634 = vrot.lane.b32.xlu0 %v577, 64
          %v635 = vpop.permute.xlu0 %634
          %636 = vrot.lane.b32.xlu0 %v578, 64
          %v637 = vpop.permute.xlu0 %636
          %638 = vrot.lane.b32.xlu0 %v579, 64
          %v639 = vpop.permute.xlu0 %638
          %640 = vrot.lane.b32.xlu0 %v580, 64
          %v641 = vpop.permute.xlu0 %640
          %642 = vrot.lane.b32.xlu0 %v581, 64
          %v643 = vpop.permute.xlu0 %642
          %644 = vrot.lane.b32.xlu0 %v582, 64
          %v645 = vpop.permute.xlu0 %644
          %646 = vrot.lane.b32.xlu0 %v583, 64
          %v647 = vpop.permute.xlu0 %646
          %v664 = vadd.f32 %v584, %v617
          %v665 = vadd.f32 %v585, %v619
          %v666 = vadd.f32 %v586, %v621
          %v667 = vadd.f32 %v587, %v623
          %v668 = vadd.f32 %v588, %v625
          %v669 = vadd.f32 %v589, %v627
          %v670 = vadd.f32 %v590, %v629
          %v671 = vadd.f32 %v591, %v631
          %v672 = vadd.f32 %v592, %v633
          %v673 = vadd.f32 %v593, %v635
          %v674 = vadd.f32 %v594, %v637
          %v675 = vadd.f32 %v595, %v639
          %v676 = vadd.f32 %v596, %v641
          %v677 = vadd.f32 %v597, %v643
          %v678 = vadd.f32 %v598, %v645
          %v679 = vadd.f32 %v599, %v647
          %v680 = vld [vmem:[%s2] sm:$0x1]
          %v682 = vperm.slane %v680, 0
          %v684 = vadd.f32 %v664, %v682
          %v685 = vadd.f32 %v665, %v682
          %v686 = vadd.f32 %v666, %v682
          %v687 = vadd.f32 %v667, %v682
          %v688 = vadd.f32 %v668, %v682
          %v689 = vadd.f32 %v669, %v682
          %v690 = vadd.f32 %v670, %v682
          %v691 = vadd.f32 %v671, %v682
          %v692 = vadd.f32 %v672, %v682
          %v693 = vadd.f32 %v673, %v682
          %v694 = vadd.f32 %v674, %v682
          %v695 = vadd.f32 %v675, %v682
          %v696 = vadd.f32 %v676, %v682
          %v697 = vadd.f32 %v677, %v682
          %v698 = vadd.f32 %v678, %v682
          %v699 = vadd.f32 %v679, %v682
          %vm700 = vcmask 523264
          %701 = vst.msk [vmem:[%s291] sm:$0xff] %vm700, %v684
          %702 = vst.msk [vmem:[%s291 + $0x8] sm:$0xff] %vm700, %v685
          %703 = vst.msk [vmem:[%s291 + $0x10] sm:$0xff] %vm700, %v686
          %704 = vst.msk [vmem:[%s291 + $0x18] sm:$0xff] %vm700, %v687
          %705 = vst.msk [vmem:[%s291 + $0x20] sm:$0xff] %vm700, %v688
          %706 = vst.msk [vmem:[%s291 + $0x28] sm:$0xff] %vm700, %v689
          %707 = vst.msk [vmem:[%s291 + $0x30] sm:$0xff] %vm700, %v690
          %708 = vst.msk [vmem:[%s291 + $0x38] sm:$0xff] %vm700, %v691
          %709 = vst.msk [vmem:[%s291 + $0x40] sm:$0xff] %vm700, %v692
          %710 = vst.msk [vmem:[%s291 + $0x48] sm:$0xff] %vm700, %v693
          %711 = vst.msk [vmem:[%s291 + $0x50] sm:$0xff] %vm700, %v694
          %712 = vst.msk [vmem:[%s291 + $0x58] sm:$0xff] %vm700, %v695
          %713 = vst.msk [vmem:[%s291 + $0x60] sm:$0xff] %vm700, %v696
          %714 = vst.msk [vmem:[%s291 + $0x68] sm:$0xff] %vm700, %v697
          %715 = vst.msk [vmem:[%s291 + $0x70] sm:$0xff] %vm700, %v698
          %716 = vst.msk [vmem:[%s291 + $0x78] sm:$0xff] %vm700, %v699
        $region81: #{gcn_forward.5} parent=68 // pred_fallthru
          _
        %s717 = smul.u32 16, %s18
        %p718 = scmp.lt.s32.totalorder %s717, 31
        %s719 = scalar_select %p718, %s717, 31
        %s720 = smul.addr %s719, 8
        %s721 = scalar_lea.vmem %s3, %s720
        // Predicated region
        $region82: #{gcn_forward.5} parent=68 // pred_check
          %p722 = pneg %p114
        $region83: #{gcn_forward.5} parent=68 // pred_check_branch
          %724 = sbr.rel (%p722) target = $region85
        $region84: #{gcn_forward.5} parent=68 // pred_region
          %s725 = smul.u32 16, %s18
        $region85: #{gcn_forward.5} parent=68 // pred_fallthru
          _
      $region69: #{gcn_forward.5} parent=5 // pred_fallthru
        _
      %p726 = scmp.le.s32.totalorder 2, %s9
      // Predicated region
      $region86: #{gcn_forward.5} parent=5 // pred_check
        %p727 = pneg %p726
      $region87: #{gcn_forward.5} parent=5 // pred_check_branch
        %729 = sbr.rel (%p727) target = $region89
      $region88: #{gcn_forward.5} parent=5 // pred_region
        %s730 = ssub.s32 %s9, 2
        // Predicated region
        $region90: #{gcn_forward.5} parent=88 // pred_check
          %p731 = pneg %p120
        $region91: #{gcn_forward.5} parent=88 // pred_check_branch
          %733 = sbr.rel (%p731) target = $region93
        $region92: #{gcn_forward.5} parent=88 // pred_region
          %s734 = smul.u32 16, %s20
          %p735 = scmp.lt.s32.totalorder %s734, 31
          %s736 = scalar_select %p735, %s734, 31
          %s737 = smul.addr %s736, 8
          %s738 = scalar_lea.vmem %s3, %s737
        $region93: #{gcn_forward.5} parent=88 // pred_fallthru
          _
      $region89: #{gcn_forward.5} parent=5 // pred_fallthru
        _
    $region6: #{gcn_forward.5} parent=1 // loop_footer
      %s13 = sadd.s32 1, %s9
    $region7: #{gcn_forward.5} parent=1 // loop_footer_branch
      %8 = sbr.rel target = $region3
    $region8: #{gcn_forward.5} parent=1 // loop_exit
      _

// kernel: gcn_forward.4
$region0: #{gcn_forward.4}
  #allocation0 [shape = 'u32[]', space=smem, size = 0x4, offset = 0x4, fixed_abs, tag = 'smem constant byte address 0x4 - core index']
  #allocation1 [shape = 'u32[72,128]{1,0:T(1,128)}', space=vmem, size = 0x9000, scoped, tag = 'internal scratch']
  #allocation2 [shape = 'f32[128,128]{1,0:T(8,128)}', space=vmem, size = 0x10000, scoped, tag = 'scratch operand']
  %s0 = inlined_call_operand.vmem [shape: bf16[256,256], index: 0, kind: input, shape index: {}]
  %s1 = inlined_call_operand.vmem [shape: bf16[256,128], index: 1, kind: input, shape index: {}]
  %s2 = inlined_call_operand.vmem [shape: f32[128,128], index: 2, kind: input, shape index: {}]
  %s3 = inlined_call_operand.vmem [shape: f32[128,128], index: 3, kind: input, shape index: {}]
  %s4 = inlined_call_operand.vmem [shape: f32[1,128], index: 4, kind: input, shape index: {}]
  %s5 = inlined_call_operand.vmem [shape: f32[128,128], index: 5, kind: input, shape index: {}]
  %s6 = inlined_call_operand.vmem [shape: bf16[256,128], index: 6, kind: output, shape index: {}]
  %s7 = sld [smem:[#allocation0]]
  $region106: #{gcn_forward.4} parent=0
    _
  %s9 = ssub.s32 1, %s7
  %s10 = scalar_select 0, %s9, %s7
  $region1: #{gcn_forward.4} parent=0
    #allocation3 [shape = 'u8[65536]{0}', space=vmem, size = 0x10000, scoped, tag = 'input window, operand 0']
    loop: start=0, step=1, limit=6
    $region2: #{gcn_forward.4} parent=1 // loop_pre_header
      _
    $region3: #{gcn_forward.4} parent=1 // loop_header
      %s12 = sphi 0, %s16
      %p13 = scmp.ge.s32.totalorder %s12, 6
      %s19 = sphi 0, %s31
      %s20 = sphi 0, %s27
      %s21 = sphi 0, %s19
      %s22 = sphi 0, %s20
      %s23 = sphi 0, %s21
      %s24 = sphi 0, %s22
      %s36 = sphi 0, %s38
      %s39 = sphi 0, %s36
      %s40 = sphi 0, %s39
      %s56 = sphi 0, %s40
      %s60 = sphi 0, %s60
      %s62 = sphi 0, %s60
      %s63 = sphi 0, %s62
      %s77 = sphi 0, %s63
      %s81 = sphi 0, %s81
      %s83 = sphi 0, %s81
      %s84 = sphi 0, %s83
      %s98 = sphi 0, %s84
      %s102 = sphi 0, %s102
      %s104 = sphi 0, %s102
      %s105 = sphi 0, %s104
      %s119 = sphi 0, %s105
      %s123 = sphi 0, %s123
      %s125 = sphi 0, %s123
      %s126 = sphi 0, %s125
      %s140 = sphi 0, %s126
      %s144 = sphi 0, %s144
      %s146 = sphi 0, %s144
      %s147 = sphi 0, %s146
      %s161 = sphi 0, %s147
      %s167 = sphi 0, %s169
      %s170 = sphi 0, %s167
      %s171 = sphi 0, %s170
      %s187 = sphi 0, %s171
    $region4: #{gcn_forward.4} parent=1 // loop_header_branch
      %15 = sbr.rel (%p13) target = $region8
    $region5: #{gcn_forward.4} parent=1 // loop_body
      %s17 = ssub.s32 %s12, 1
      %s18 = ssub.s32 %s12, 2
      %s25 = sadd.s32 1, %s20
      %p26 = scmp.ge.s32.totalorder %s25, 2
      %s27 = scalar_select %p26, 0, %s25
      %s28 = sadd.s32 1, %s19
      %s29 = scalar_select %p26, %s28, %s19
      %p30 = scmp.ge.s32.totalorder %s29, 2
      %s31 = scalar_select %p30, 0, %s29
      %s32 = ssub.s32 %s19, %s31
      %s33 = ssub.s32 %s20, %s27
      %s34 = sor.u32 %s32, %s33
      %p35 = scmp.eq.s32.totalorder %s34, 0
      %s37 = sadd.s32 %s36, 1
      %s38 = scalar_select %p35, %s36, %s37
      %p41 = pneg %p35
      %p42 = scmp.eq.s32.totalorder %s12, 3
      %p43 = por %p41, %p42
      %p44 = scmp.ne.s32.totalorder %s36, %s39
      %p45 = scmp.eq.s32.totalorder %s12, 0
      %p46 = por %p44, %p45
      %p47 = scmp.ne.s32.totalorder %s36, %s39
      %p48 = scmp.eq.s32.totalorder %s17, 3
      %p49 = por %p47, %p48
      %p50 = scmp.ne.s32.totalorder %s39, %s40
      %p51 = scmp.eq.s32.totalorder %s17, 0
      %p52 = por %p50, %p51
      %p53 = scmp.ne.s32.totalorder %s39, %s40
      %p54 = scmp.eq.s32.totalorder %s18, 3
      %p55 = por %p53, %p54
      %p57 = scmp.ne.s32.totalorder %s40, %s56
      %p58 = scmp.eq.s32.totalorder %s18, 0
      %p59 = por %p57, %p58
      %s61 = sadd.s32 %s60, 1
      %p64 = scmp.eq.s32.totalorder %s12, 3
      %p65 = scmp.ne.s32.totalorder %s60, %s62
      %p66 = scmp.eq.s32.totalorder %s12, 0
      %p67 = por %p65, %p66
      %p68 = scmp.ne.s32.totalorder %s60, %s62
      %p69 = scmp.eq.s32.totalorder %s17, 3
      %p70 = por %p68, %p69
      %p71 = scmp.ne.s32.totalorder %s62, %s63
      %p72 = scmp.eq.s32.totalorder %s17, 0
      %p73 = por %p71, %p72
      %p74 = scmp.ne.s32.totalorder %s62, %s63
      %p75 = scmp.eq.s32.totalorder %s18, 3
      %p76 = por %p74, %p75
      %p78 = scmp.ne.s32.totalorder %s63, %s77
      %p79 = scmp.eq.s32.totalorder %s18, 0
      %p80 = por %p78, %p79
      %s82 = sadd.s32 %s81, 1
      %p85 = scmp.eq.s32.totalorder %s12, 3
      %p86 = scmp.ne.s32.totalorder %s81, %s83
      %p87 = scmp.eq.s32.totalorder %s12, 0
      %p88 = por %p86, %p87
      %p89 = scmp.ne.s32.totalorder %s81, %s83
      %p90 = scmp.eq.s32.totalorder %s17, 3
      %p91 = por %p89, %p90
      %p92 = scmp.ne.s32.totalorder %s83, %s84
      %p93 = scmp.eq.s32.totalorder %s17, 0
      %p94 = por %p92, %p93
      %p95 = scmp.ne.s32.totalorder %s83, %s84
      %p96 = scmp.eq.s32.totalorder %s18, 3
      %p97 = por %p95, %p96
      %p99 = scmp.ne.s32.totalorder %s84, %s98
      %p100 = scmp.eq.s32.totalorder %s18, 0
      %p101 = por %p99, %p100
      %s103 = sadd.s32 %s102, 1
      %p106 = scmp.eq.s32.totalorder %s12, 3
      %p107 = scmp.ne.s32.totalorder %s102, %s104
      %p108 = scmp.eq.s32.totalorder %s12, 0
      %p109 = por %p107, %p108
      %p110 = scmp.ne.s32.totalorder %s102, %s104
      %p111 = scmp.eq.s32.totalorder %s17, 3
      %p112 = por %p110, %p111
      %p113 = scmp.ne.s32.totalorder %s104, %s105
      %p114 = scmp.eq.s32.totalorder %s17, 0
      %p115 = por %p113, %p114
      %p116 = scmp.ne.s32.totalorder %s104, %s105
      %p117 = scmp.eq.s32.totalorder %s18, 3
      %p118 = por %p116, %p117
      %p120 = scmp.ne.s32.totalorder %s105, %s119
      %p121 = scmp.eq.s32.totalorder %s18, 0
      %p122 = por %p120, %p121
      %s124 = sadd.s32 %s123, 1
      %p127 = scmp.eq.s32.totalorder %s12, 3
      %p128 = scmp.ne.s32.totalorder %s123, %s125
      %p129 = scmp.eq.s32.totalorder %s12, 0
      %p130 = por %p128, %p129
      %p131 = scmp.ne.s32.totalorder %s123, %s125
      %p132 = scmp.eq.s32.totalorder %s17, 3
      %p133 = por %p131, %p132
      %p134 = scmp.ne.s32.totalorder %s125, %s126
      %p135 = scmp.eq.s32.totalorder %s17, 0
      %p136 = por %p134, %p135
      %p137 = scmp.ne.s32.totalorder %s125, %s126
      %p138 = scmp.eq.s32.totalorder %s18, 3
      %p139 = por %p137, %p138
      %p141 = scmp.ne.s32.totalorder %s126, %s140
      %p142 = scmp.eq.s32.totalorder %s18, 0
      %p143 = por %p141, %p142
      %s145 = sadd.s32 %s144, 1
      %p148 = scmp.eq.s32.totalorder %s12, 3
      %p149 = scmp.ne.s32.totalorder %s144, %s146
      %p150 = scmp.eq.s32.totalorder %s12, 0
      %p151 = por %p149, %p150
      %p152 = scmp.ne.s32.totalorder %s144, %s146
      %p153 = scmp.eq.s32.totalorder %s17, 3
      %p154 = por %p152, %p153
      %p155 = scmp.ne.s32.totalorder %s146, %s147
      %p156 = scmp.eq.s32.totalorder %s17, 0
      %p157 = por %p155, %p156
      %p158 = scmp.ne.s32.totalorder %s146, %s147
      %p159 = scmp.eq.s32.totalorder %s18, 3
      %p160 = por %p158, %p159
      %p162 = scmp.ne.s32.totalorder %s147, %s161
      %p163 = scmp.eq.s32.totalorder %s18, 0
      %p164 = por %p162, %p163
      %s165 = ssub.s32 %s19, %s31
      %p166 = scmp.eq.s32.totalorder %s165, 0
      %s168 = sadd.s32 %s167, 1
      %s169 = scalar_select %p166, %s167, %s168
      %p172 = pneg %p166
      %p173 = scmp.eq.s32.totalorder %s12, 3
      %p174 = por %p172, %p173
      %p175 = scmp.ne.s32.totalorder %s167, %s170
      %p176 = scmp.eq.s32.totalorder %s12, 0
      %p177 = por %p175, %p176
      %p178 = scmp.ne.s32.totalorder %s167, %s170
      %p179 = scmp.eq.s32.totalorder %s17, 3
      %p180 = por %p178, %p179
      %p181 = scmp.ne.s32.totalorder %s170, %s171
      %p182 = scmp.eq.s32.totalorder %s17, 0
      %p183 = por %p181, %p182
      %p184 = scmp.ne.s32.totalorder %s170, %s171
      %p185 = scmp.eq.s32.totalorder %s18, 3
      %p186 = por %p184, %p185
      %p188 = scmp.ne.s32.totalorder %s171, %s187
      %p189 = scmp.eq.s32.totalorder %s18, 0
      %p190 = por %p188, %p189
      %p191 = scmp.le.s32.totalorder 1, %s12
      %p192 = scmp.lt.s32.totalorder %s12, 5
      %p193 = pnand %p191, %p192
      %p194 = pneg %p193
      // Predicated region
      $region9: #{gcn_forward.4} parent=5 // pred_check
        _
      $region10: #{gcn_forward.4} parent=5 // pred_check_branch
        %196 = sbr.rel (%p193) target = $region12
      $region11: #{gcn_forward.4} parent=5 // pred_region
        %s197 = ssub.s32 %s12, 1
        // Predicated region
        $region13: #{gcn_forward.4} parent=11 // pred_check
          %p198 = pneg %p73
        $region14: #{gcn_forward.4} parent=11 // pred_check_branch
          %200 = sbr.rel (%p198) target = $region16
        $region15: #{gcn_forward.4} parent=11 // pred_region
          _
        $region16: #{gcn_forward.4} parent=11 // pred_fallthru
          _
        // Predicated region
        $region17: #{gcn_forward.4} parent=11 // pred_check
          %p201 = pneg %p94
        $region18: #{gcn_forward.4} parent=11 // pred_check_branch
          %203 = sbr.rel (%p201) target = $region20
        $region19: #{gcn_forward.4} parent=11 // pred_region
          _
        $region20: #{gcn_forward.4} parent=11 // pred_fallthru
          _
        // Predicated region
        $region21: #{gcn_forward.4} parent=11 // pred_check
          %p204 = pneg %p115
        $region22: #{gcn_forward.4} parent=11 // pred_check_branch
          %206 = sbr.rel (%p204) target = $region24
        $region23: #{gcn_forward.4} parent=11 // pred_region
          _
        $region24: #{gcn_forward.4} parent=11 // pred_fallthru
          _
        // Predicated region
        $region25: #{gcn_forward.4} parent=11 // pred_check
          %p207 = pneg %p136
        $region26: #{gcn_forward.4} parent=11 // pred_check_branch
          %209 = sbr.rel (%p207) target = $region28
        $region27: #{gcn_forward.4} parent=11 // pred_region
          _
        $region28: #{gcn_forward.4} parent=11 // pred_fallthru
          _
        // Predicated region
        $region29: #{gcn_forward.4} parent=11 // pred_check
          %p210 = pneg %p157
        $region30: #{gcn_forward.4} parent=11 // pred_check_branch
          %212 = sbr.rel (%p210) target = $region32
        $region31: #{gcn_forward.4} parent=11 // pred_region
          _
        $region32: #{gcn_forward.4} parent=11 // pred_fallthru
          _
      $region12: #{gcn_forward.4} parent=5 // pred_fallthru
        _
      %p213 = scmp.lt.s32.totalorder %s12, 4
      // Predicated region
      $region33: #{gcn_forward.4} parent=5 // pred_check
        %p214 = pneg %p213
      $region34: #{gcn_forward.4} parent=5 // pred_check_branch
        %216 = sbr.rel (%p214) target = $region36
      $region35: #{gcn_forward.4} parent=5 // pred_region
        // Predicated region
        $region37: #{gcn_forward.4} parent=35 // pred_check
          %p217 = pneg %p46
        $region38: #{gcn_forward.4} parent=35 // pred_check_branch
          %219 = sbr.rel (%p217) target = $region40
        $region39: #{gcn_forward.4} parent=35 // pred_region
          %s220 = sand.u32 %s36, 1
          %s221 = sand.u32 %s36, 1
          %s222 = smul.addr %s221, 64
          %s223 = scalar_lea.vmem [#allocation3], %s222
          %s224 = smul.u32 16, %s19
          %s225 = smul.addr %s224, 2
          %s226 = sadd.s32 %s20, %s225
          %s227 = smul.addr %s226, 4
          %s228 = scalar_lea.vmem %s0, %s227
          // Predicated region
          $region41: #{gcn_forward.4} parent=39 // pred_check
            _
          $region42: #{gcn_forward.4} parent=39 // pred_check_branch
            %230 = sbr.rel (0) target = $region44
          $region43: #{gcn_forward.4} parent=39 // pred_region
            // Predicated region
            $region45: #{gcn_forward.4} parent=43 // pred_check
              _
            $region46: #{gcn_forward.4} parent=43 // pred_check_branch
              %232 = sbr.rel target = $region48
            $region47: #{gcn_forward.4} parent=43 // pred_region
              // Predicated region
              $region60: #{gcn_forward.4} parent=47 // pred_check
                _
              $region61: #{gcn_forward.4} parent=47 // pred_check_branch
                %278 = sbr.rel (0) target = $region63
              $region62: #{gcn_forward.4} parent=47 // pred_region
                loop: start=0, step=1, limit=1
                $region64: #{gcn_forward.4} parent=62 // loop_pre_header
                  _
                $region65: #{gcn_forward.4} parent=62 // loop_header
                  %s280 = sphi 0, %s284
                  %p281 = scmp.ge.s32.totalorder %s280, 1
                  %s285 = sphi %s228, %s228
                  %s286 = sphi %s223, %s223
                $region66: #{gcn_forward.4} parent=62 // loop_header_branch
                  %283 = sbr.rel (%p281) target = $region70
                $region67: #{gcn_forward.4} parent=62 // loop_body
                  _
                $region68: #{gcn_forward.4} parent=62 // loop_footer
                  %s284 = sadd.s32 1, %s280
                $region69: #{gcn_forward.4} parent=62 // loop_footer_branch
                  %279 = sbr.rel target = $region65
                $region70: #{gcn_forward.4} parent=62 // loop_exit
                  _
                %s288 = ssub.s32 16, 1
                loop: start=0, step=1, limit=1
                $region71: #{gcn_forward.4} parent=62 // loop_pre_header
                  _
                $region72: #{gcn_forward.4} parent=62 // loop_header
                  %s290 = sphi 0, %s294
                  %p291 = scmp.ge.s32.totalorder %s290, 1
                  %s295 = sphi %s228, %s228
                  %s296 = sphi %s223, %s223
                $region73: #{gcn_forward.4} parent=62 // loop_header_branch
                  %293 = sbr.rel (%p291) target = $region77
                $region74: #{gcn_forward.4} parent=62 // loop_body
                  %v297 = vld [vmem:[%s295] sm:%s288]
                  %298 = vst [vmem:[%s296] sm:%s288] %v297
                  %v299 = vld [vmem:[%s295 + $0x8] sm:%s288]
                  %300 = vst [vmem:[%s296 + $0x4] sm:%s288] %v299
                  %v301 = vld [vmem:[%s295 + $0x10] sm:%s288]
                  %302 = vst [vmem:[%s296 + $0x8] sm:%s288] %v301
                  %v303 = vld [vmem:[%s295 + $0x18] sm:%s288]
                  %304 = vst [vmem:[%s296 + $0xc] sm:%s288] %v303
                  %v305 = vld [vmem:[%s295 + $0x20] sm:%s288]
                  %306 = vst [vmem:[%s296 + $0x10] sm:%s288] %v305
                  %v307 = vld [vmem:[%s295 + $0x28] sm:%s288]
                  %308 = vst [vmem:[%s296 + $0x14] sm:%s288] %v307
                  %v309 = vld [vmem:[%s295 + $0x30] sm:%s288]
                  %310 = vst [vmem:[%s296 + $0x18] sm:%s288] %v309
                  %v311 = vld [vmem:[%s295 + $0x38] sm:%s288]
                  %312 = vst [vmem:[%s296 + $0x1c] sm:%s288] %v311
                  %v313 = vld [vmem:[%s295 + $0x40] sm:%s288]
                  %314 = vst [vmem:[%s296 + $0x20] sm:%s288] %v313
                  %v315 = vld [vmem:[%s295 + $0x48] sm:%s288]
                  %316 = vst [vmem:[%s296 + $0x24] sm:%s288] %v315
                  %v317 = vld [vmem:[%s295 + $0x50] sm:%s288]
                  %318 = vst [vmem:[%s296 + $0x28] sm:%s288] %v317
                  %v319 = vld [vmem:[%s295 + $0x58] sm:%s288]
                  %320 = vst [vmem:[%s296 + $0x2c] sm:%s288] %v319
                  %v321 = vld [vmem:[%s295 + $0x60] sm:%s288]
                  %322 = vst [vmem:[%s296 + $0x30] sm:%s288] %v321
                  %v323 = vld [vmem:[%s295 + $0x68] sm:%s288]
                  %324 = vst [vmem:[%s296 + $0x34] sm:%s288] %v323
                  %v325 = vld [vmem:[%s295 + $0x70] sm:%s288]
                  %326 = vst [vmem:[%s296 + $0x38] sm:%s288] %v325
                  %v327 = vld [vmem:[%s295 + $0x78] sm:%s288]
                  %328 = vst [vmem:[%s296 + $0x3c] sm:%s288] %v327
                $region75: #{gcn_forward.4} parent=62 // loop_footer
                  %s294 = sadd.s32 1, %s290
                $region76: #{gcn_forward.4} parent=62 // loop_footer_branch
                  %289 = sbr.rel target = $region72
                $region77: #{gcn_forward.4} parent=62 // loop_exit
                  _
              $region63: #{gcn_forward.4} parent=47 // pred_fallthru
                _
            $region48: #{gcn_forward.4} parent=43 // pred_fallthru
              _
            // Predicated region
            $region49: #{gcn_forward.4} parent=43 // pred_check
              _
            $region50: #{gcn_forward.4} parent=43 // pred_check_branch
              %234 = sbr.rel (0) target = $region52
            $region51: #{gcn_forward.4} parent=43 // pred_region
              %s236 = ssub.s32 16, 1
              loop: start=0, step=1, limit=1
              $region53: #{gcn_forward.4} parent=51 // loop_pre_header
                _
              $region54: #{gcn_forward.4} parent=51 // loop_header
                %s238 = sphi 0, %s242
                %p239 = scmp.ge.s32.totalorder %s238, 1
                %s243 = sphi %s228, %s228
                %s244 = sphi %s223, %s223
              $region55: #{gcn_forward.4} parent=51 // loop_header_branch
                %241 = sbr.rel (%p239) target = $region59
              $region56: #{gcn_forward.4} parent=51 // loop_body
                %v245 = vld [vmem:[%s243] sm:%s236]
                %246 = vst [vmem:[%s244] sm:%s236] %v245
                %v247 = vld [vmem:[%s243 + $0x8] sm:%s236]
                %248 = vst [vmem:[%s244 + $0x4] sm:%s236] %v247
                %v249 = vld [vmem:[%s243 + $0x10] sm:%s236]
                %250 = vst [vmem:[%s244 + $0x8] sm:%s236] %v249
                %v251 = vld [vmem:[%s243 + $0x18] sm:%s236]
                %252 = vst [vmem:[%s244 + $0xc] sm:%s236] %v251
                %v253 = vld [vmem:[%s243 + $0x20] sm:%s236]
                %254 = vst [vmem:[%s244 + $0x10] sm:%s236] %v253
                %v255 = vld [vmem:[%s243 + $0x28] sm:%s236]
                %256 = vst [vmem:[%s244 + $0x14] sm:%s236] %v255
                %v257 = vld [vmem:[%s243 + $0x30] sm:%s236]
                %258 = vst [vmem:[%s244 + $0x18] sm:%s236] %v257
                %v259 = vld [vmem:[%s243 + $0x38] sm:%s236]
                %260 = vst [vmem:[%s244 + $0x1c] sm:%s236] %v259
                %v261 = vld [vmem:[%s243 + $0x40] sm:%s236]
                %262 = vst [vmem:[%s244 + $0x20] sm:%s236] %v261
                %v263 = vld [vmem:[%s243 + $0x48] sm:%s236]
                %264 = vst [vmem:[%s244 + $0x24] sm:%s236] %v263
                %v265 = vld [vmem:[%s243 + $0x50] sm:%s236]
                %266 = vst [vmem:[%s244 + $0x28] sm:%s236] %v265
                %v267 = vld [vmem:[%s243 + $0x58] sm:%s236]
                %268 = vst [vmem:[%s244 + $0x2c] sm:%s236] %v267
                %v269 = vld [vmem:[%s243 + $0x60] sm:%s236]
                %270 = vst [vmem:[%s244 + $0x30] sm:%s236] %v269
                %v271 = vld [vmem:[%s243 + $0x68] sm:%s236]
                %272 = vst [vmem:[%s244 + $0x34] sm:%s236] %v271
                %v273 = vld [vmem:[%s243 + $0x70] sm:%s236]
                %274 = vst [vmem:[%s244 + $0x38] sm:%s236] %v273
                %v275 = vld [vmem:[%s243 + $0x78] sm:%s236]
                %276 = vst [vmem:[%s244 + $0x3c] sm:%s236] %v275
              $region57: #{gcn_forward.4} parent=51 // loop_footer
                %s242 = sadd.s32 1, %s238
              $region58: #{gcn_forward.4} parent=51 // loop_footer_branch
                %237 = sbr.rel target = $region54
              $region59: #{gcn_forward.4} parent=51 // loop_exit
                _
            $region52: #{gcn_forward.4} parent=43 // pred_fallthru
              _
          $region44: #{gcn_forward.4} parent=39 // pred_fallthru
            _
          %329 = vnop
        $region40: #{gcn_forward.4} parent=35 // pred_fallthru
          _
      $region36: #{gcn_forward.4} parent=5 // pred_fallthru
        _
      %p330 = scmp.le.s32.totalorder 1, %s12
      %p331 = scmp.lt.s32.totalorder %s12, 5
      %p332 = pnand %p330, %p331
      %p333 = pneg %p332
      // Predicated region
      $region78: #{gcn_forward.4} parent=5 // pred_check
        _
      $region79: #{gcn_forward.4} parent=5 // pred_check_branch
        %335 = sbr.rel (%p332) target = $region81
      $region80: #{gcn_forward.4} parent=5 // pred_region
        %s336 = ssub.s32 %s12, 1
        %s337 = sand.u32 %s39, 1
        %s338 = sand.u32 %s39, 1
        %s339 = smul.addr %s338, 64
        %s340 = scalar_lea.vmem [#allocation3], %s339
        // Predicated region
        $region82: #{gcn_forward.4} parent=80 // pred_check
          %p341 = pneg %p52
        $region83: #{gcn_forward.4} parent=80 // pred_check_branch
          %343 = sbr.rel (%p341) target = $region85
        $region84: #{gcn_forward.4} parent=80 // pred_region
          _
        $region85: #{gcn_forward.4} parent=80 // pred_fallthru
          _
        %s344 = sand.u32 %s39, 1
        %s345 = sand.u32 %s39, 1
        %s346 = smul.addr %s345, 64
        %s347 = scalar_lea.vmem [#allocation3], %s346
        %p348 = pneg %p52
        %p349 = pneg %p49
        %p350 = pneg %p73
        %p351 = pneg %p70
        %p352 = pneg %p94
        %p353 = pneg %p91
        %p354 = pneg %p115
        %p355 = pneg %p112
        %p356 = pneg %p136
        %p357 = pneg %p133
        %p358 = pneg %p157
        %p359 = pneg %p154
        %p360 = pneg %p183
        %p361 = pneg %p180
        %s362 = smul.u32 16, %s21
        %p363 = scmp.lt.s32.totalorder %s362, 31
        %s364 = scalar_select %p363, %s362, 31
        %s365 = smul.addr %s364, 4
        %s366 = scalar_lea.vmem %s6, %s365
        %s367 = smul.u32 16, %s21
        %s368 = smul.u32 16, %s21
        %p369 = scmp.lt.s32.totalorder %s368, 31
        %s370 = scalar_select %p369, %s368, 31
        %s371 = smul.addr %s370, 4
        %s372 = scalar_lea.vmem %s6, %s371
        %s373 = smul.u32 16, %s21
        %p374 = scmp.eq.s32.totalorder %s22, 0
        // Predicated region
        $region86: #{gcn_forward.4} parent=80 // pred_check
          %p375 = pneg %p374
        $region87: #{gcn_forward.4} parent=80 // pred_check_branch
          %377 = sbr.rel (%p375) target = $region89
        $region88: #{gcn_forward.4} parent=80 // pred_region
          %378 = vst [vmem:[#allocation2] sm:$0xff] 0.0
          %379 = vst [vmem:[#allocation2 + $0x8] sm:$0xff] 0.0
          %380 = vst [vmem:[#allocation2 + $0x10] sm:$0xff] 0.0
          %381 = vst [vmem:[#allocation2 + $0x18] sm:$0xff] 0.0
          %382 = vst [vmem:[#allocation2 + $0x20] sm:$0xff] 0.0
          %383 = vst [vmem:[#allocation2 + $0x28] sm:$0xff] 0.0
          %384 = vst [vmem:[#allocation2 + $0x30] sm:$0xff] 0.0
          %385 = vst [vmem:[#allocation2 + $0x38] sm:$0xff] 0.0
          %386 = vst [vmem:[#allocation2 + $0x40] sm:$0xff] 0.0
          %387 = vst [vmem:[#allocation2 + $0x48] sm:$0xff] 0.0
          %388 = vst [vmem:[#allocation2 + $0x50] sm:$0xff] 0.0
          %389 = vst [vmem:[#allocation2 + $0x58] sm:$0xff] 0.0
          %390 = vst [vmem:[#allocation2 + $0x60] sm:$0xff] 0.0
          %391 = vst [vmem:[#allocation2 + $0x68] sm:$0xff] 0.0
          %392 = vst [vmem:[#allocation2 + $0x70] sm:$0xff] 0.0
          %393 = vst [vmem:[#allocation2 + $0x78] sm:$0xff] 0.0
        $region89: #{gcn_forward.4} parent=80 // pred_fallthru
          _
        %s394 = smul.u32 %s22, 128
        %v395 = vld [vmem:[#allocation2] sm:$0xff]
        %v396 = vld [vmem:[#allocation2 + $0x8] sm:$0xff]
        %v397 = vld [vmem:[#allocation2 + $0x10] sm:$0xff]
        %v398 = vld [vmem:[#allocation2 + $0x18] sm:$0xff]
        %v399 = vld [vmem:[#allocation2 + $0x20] sm:$0xff]
        %v400 = vld [vmem:[#allocation2 + $0x28] sm:$0xff]
        %v401 = vld [vmem:[#allocation2 + $0x30] sm:$0xff]
        %v402 = vld [vmem:[#allocation2 + $0x38] sm:$0xff]
        %v403 = vld [vmem:[#allocation2 + $0x40] sm:$0xff]
        %v404 = vld [vmem:[#allocation2 + $0x48] sm:$0xff]
        %v405 = vld [vmem:[#allocation2 + $0x50] sm:$0xff]
        %v406 = vld [vmem:[#allocation2 + $0x58] sm:$0xff]
        %v407 = vld [vmem:[#allocation2 + $0x60] sm:$0xff]
        %v408 = vld [vmem:[#allocation2 + $0x68] sm:$0xff]
        %v409 = vld [vmem:[#allocation2 + $0x70] sm:$0xff]
        %v410 = vld [vmem:[#allocation2 + $0x78] sm:$0xff]
        %v411 = vld [vmem:[%s340] sm:$0xf]
        %v412 = vld [vmem:[%s340 + $0x4] sm:$0xf]
        %v413 = vld [vmem:[%s340 + $0x8] sm:$0xf]
        %v414 = vld [vmem:[%s340 + $0xc] sm:$0xf]
        %v415 = vld [vmem:[%s340 + $0x10] sm:$0xf]
        %v416 = vld [vmem:[%s340 + $0x14] sm:$0xf]
        %v417 = vld [vmem:[%s340 + $0x18] sm:$0xf]
        %v418 = vld [vmem:[%s340 + $0x1c] sm:$0xf]
        %v419 = vld [vmem:[%s340 + $0x20] sm:$0xf]
        %v420 = vld [vmem:[%s340 + $0x24] sm:$0xf]
        %v421 = vld [vmem:[%s340 + $0x28] sm:$0xf]
        %v422 = vld [vmem:[%s340 + $0x2c] sm:$0xf]
        %v423 = vld [vmem:[%s340 + $0x30] sm:$0xf]
        %v424 = vld [vmem:[%s340 + $0x34] sm:$0xf]
        %v425 = vld [vmem:[%s340 + $0x38] sm:$0xf]
        %v426 = vld [vmem:[%s340 + $0x3c] sm:$0xf]
        %s427 = sshra.s32 %s394, 3
        %s428 = sand.u32 %s394, 7
        %s429 = smul.addr %s427, 4
        %s430 = scalar_lea.vmem %s1, %s429
        %v431 = vld [vmem:[%s430] sm:$0xf]
        %v432 = vld [vmem:[%s430 + $0x4] sm:$0xf]
        %v433 = vld [vmem:[%s430 + $0x8] sm:$0xf]
        %v434 = vld [vmem:[%s430 + $0xc] sm:$0xf]
        %v435 = vld [vmem:[%s430 + $0x10] sm:$0xf]
        %v436 = vld [vmem:[%s430 + $0x14] sm:$0xf]
        %v437 = vld [vmem:[%s430 + $0x18] sm:$0xf]
        %v438 = vld [vmem:[%s430 + $0x1c] sm:$0xf]
        %v439 = vld [vmem:[%s430 + $0x20] sm:$0xf]
        %v440 = vld [vmem:[%s430 + $0x24] sm:$0xf]
        %v441 = vld [vmem:[%s430 + $0x28] sm:$0xf]
        %v442 = vld [vmem:[%s430 + $0x2c] sm:$0xf]
        %v443 = vld [vmem:[%s430 + $0x30] sm:$0xf]
        %v444 = vld [vmem:[%s430 + $0x34] sm:$0xf]
        %v445 = vld [vmem:[%s430 + $0x38] sm:$0xf]
        %v446 = vld [vmem:[%s430 + $0x3c] sm:$0xf]
        %v463 = vunpack.c.l.b16 %v411
        %v464 = vunpack.c.l.b16 %v412
        %v465 = vunpack.c.l.b16 %v413
        %v466 = vunpack.c.l.b16 %v414
        %v467 = vunpack.c.l.b16 %v415
        %v468 = vunpack.c.l.b16 %v416
        %v469 = vunpack.c.l.b16 %v417
        %v470 = vunpack.c.l.b16 %v418
        %v471 = vunpack.c.l.b16 %v419
        %v472 = vunpack.c.l.b16 %v420
        %v473 = vunpack.c.l.b16 %v421
        %v474 = vunpack.c.l.b16 %v422
        %v475 = vunpack.c.l.b16 %v423
        %v476 = vunpack.c.l.b16 %v424
        %v477 = vunpack.c.l.b16 %v425
        %v478 = vunpack.c.l.b16 %v426
        %v479 = vpack.c.b16 %v464, %v463
        %v480 = vpack.c.b16 %v466, %v465
        %v481 = vpack.c.b16 %v468, %v467
        %v482 = vpack.c.b16 %v470, %v469
        %v483 = vpack.c.b16 %v472, %v471
        %v484 = vpack.c.b16 %v474, %v473
        %v485 = vpack.c.b16 %v476, %v475
        %v486 = vpack.c.b16 %v478, %v477
        %v511 = vunpack.c.l.b16 %v431
        %v512 = vunpack.c.l.b16 %v432
        %v513 = vunpack.c.l.b16 %v433
        %v514 = vunpack.c.l.b16 %v434
        %v515 = vunpack.c.l.b16 %v435
        %v516 = vunpack.c.l.b16 %v436
        %v517 = vunpack.c.l.b16 %v437
        %v518 = vunpack.c.l.b16 %v438
        %v519 = vunpack.c.l.b16 %v439
        %v520 = vunpack.c.l.b16 %v440
        %v521 = vunpack.c.l.b16 %v441
        %v522 = vunpack.c.l.b16 %v442
        %v523 = vunpack.c.l.b16 %v443
        %v524 = vunpack.c.l.b16 %v444
        %v525 = vunpack.c.l.b16 %v445
        %v526 = vunpack.c.l.b16 %v446
        %v527 = vpack.c.b16 %v512, %v511
        %v528 = vpack.c.b16 %v514, %v513
        %v529 = vpack.c.b16 %v516, %v515
        %v530 = vpack.c.b16 %v518, %v517
        %v531 = vpack.c.b16 %v520, %v519
        %v532 = vpack.c.b16 %v522, %v521
        %v533 = vpack.c.b16 %v524, %v523
        %v534 = vpack.c.b16 %v526, %v525
        %543 = vmatpush.bf16.msra.mxu0 %v534
        %544 = vmatpush.bf16.msra.mxu0 %v533
        %545 = vmatpush.bf16.msra.mxu0 %v532
        %546 = vmatpush.bf16.msra.mxu0 %v531
        %547 = vmatpush.bf16.msra.mxu0 %v530
        %548 = vmatpush.bf16.msra.mxu0 %v529
        %549 = vmatpush.bf16.msra.mxu0 %v528
        %550 = vmatpush.bf16.msra.mxu0 %v527
        %551 = vmatmul.bf16.gmra.mxu0 %v479
        %v552 = vpop.f32.mrf.mxu0
        %v553 = vadd.f32 0.0, %v552
        %v554 = vpop.f32.mrf.mxu0
        %v555 = vadd.f32 0.0, %v554
        %556 = vmatmul.bf16.gmra.mxu0 %v480
        %v557 = vpop.f32.mrf.mxu0
        %v558 = vadd.f32 0.0, %v557
        %v559 = vpop.f32.mrf.mxu0
        %v560 = vadd.f32 0.0, %v559
        %561 = vmatmul.bf16.gmra.mxu0 %v481
        %v562 = vpop.f32.mrf.mxu0
        %v563 = vadd.f32 0.0, %v562
        %v564 = vpop.f32.mrf.mxu0
        %v565 = vadd.f32 0.0, %v564
        %566 = vmatmul.bf16.gmra.mxu0 %v482
        %v567 = vpop.f32.mrf.mxu0
        %v568 = vadd.f32 0.0, %v567
        %v569 = vpop.f32.mrf.mxu0
        %v570 = vadd.f32 0.0, %v569
        %571 = vmatmul.bf16.gmra.mxu0 %v483
        %v572 = vpop.f32.mrf.mxu0
        %v573 = vadd.f32 0.0, %v572
        %v574 = vpop.f32.mrf.mxu0
        %v575 = vadd.f32 0.0, %v574
        %576 = vmatmul.bf16.gmra.mxu0 %v484
        %v577 = vpop.f32.mrf.mxu0
        %v578 = vadd.f32 0.0, %v577
        %v579 = vpop.f32.mrf.mxu0
        %v580 = vadd.f32 0.0, %v579
        %581 = vmatmul.bf16.gmra.mxu0 %v485
        %v582 = vpop.f32.mrf.mxu0
        %v583 = vadd.f32 0.0, %v582
        %v584 = vpop.f32.mrf.mxu0
        %v585 = vadd.f32 0.0, %v584
        %586 = vmatmul.bf16.gmra.mxu0 %v486
        %v587 = vpop.f32.mrf.mxu0
        %v588 = vadd.f32 0.0, %v587
        %v589 = vpop.f32.mrf.mxu0
        %v590 = vadd.f32 0.0, %v589
        %591 = vdwg.mxu0
        %v592 = vadd.f32 %v395, %v553
        %v593 = vadd.f32 %v396, %v555
        %v594 = vadd.f32 %v397, %v558
        %v595 = vadd.f32 %v398, %v560
        %v596 = vadd.f32 %v399, %v563
        %v597 = vadd.f32 %v400, %v565
        %v598 = vadd.f32 %v401, %v568
        %v599 = vadd.f32 %v402, %v570
        %v600 = vadd.f32 %v403, %v573
        %v601 = vadd.f32 %v404, %v575
        %v602 = vadd.f32 %v405, %v578
        %v603 = vadd.f32 %v406, %v580
        %v604 = vadd.f32 %v407, %v583
        %v605 = vadd.f32 %v408, %v585
        %v606 = vadd.f32 %v409, %v588
        %v607 = vadd.f32 %v410, %v590
        %608 = vst [vmem:[#allocation2] sm:$0xff] %v592
        %609 = vst [vmem:[#allocation2 + $0x8] sm:$0xff] %v593
        %610 = vst [vmem:[#allocation2 + $0x10] sm:$0xff] %v594
        %611 = vst [vmem:[#allocation2 + $0x18] sm:$0xff] %v595
        %612 = vst [vmem:[#allocation2 + $0x20] sm:$0xff] %v596
        %613 = vst [vmem:[#allocation2 + $0x28] sm:$0xff] %v597
        %614 = vst [vmem:[#allocation2 + $0x30] sm:$0xff] %v598
        %615 = vst [vmem:[#allocation2 + $0x38] sm:$0xff] %v599
        %616 = vst [vmem:[#allocation2 + $0x40] sm:$0xff] %v600
        %617 = vst [vmem:[#allocation2 + $0x48] sm:$0xff] %v601
        %618 = vst [vmem:[#allocation2 + $0x50] sm:$0xff] %v602
        %619 = vst [vmem:[#allocation2 + $0x58] sm:$0xff] %v603
        %620 = vst [vmem:[#allocation2 + $0x60] sm:$0xff] %v604
        %621 = vst [vmem:[#allocation2 + $0x68] sm:$0xff] %v605
        %622 = vst [vmem:[#allocation2 + $0x70] sm:$0xff] %v606
        %623 = vst [vmem:[#allocation2 + $0x78] sm:$0xff] %v607
        %p624 = scmp.eq.s32.totalorder %s22, 1
        // Predicated region
        $region90: #{gcn_forward.4} parent=80 // pred_check
          %p625 = pneg %p624
        $region91: #{gcn_forward.4} parent=80 // pred_check_branch
          %627 = sbr.rel (%p625) target = $region93
        $region92: #{gcn_forward.4} parent=80 // pred_region
          %s628 = smul.u32 %s21, 128
          %s629 = sshra.s32 %s628, 3
          %s630 = sand.u32 %s628, 7
          %s631 = smul.addr %s629, 4
          %s632 = scalar_lea.vmem %s1, %s631
          %v633 = vld [vmem:[%s632] sm:$0xf]
          %v634 = vld [vmem:[%s632 + $0x4] sm:$0xf]
          %v635 = vld [vmem:[%s632 + $0x8] sm:$0xf]
          %v636 = vld [vmem:[%s632 + $0xc] sm:$0xf]
          %v637 = vld [vmem:[%s632 + $0x10] sm:$0xf]
          %v638 = vld [vmem:[%s632 + $0x14] sm:$0xf]
          %v639 = vld [vmem:[%s632 + $0x18] sm:$0xf]
          %v640 = vld [vmem:[%s632 + $0x1c] sm:$0xf]
          %v641 = vld [vmem:[%s632 + $0x20] sm:$0xf]
          %v642 = vld [vmem:[%s632 + $0x24] sm:$0xf]
          %v643 = vld [vmem:[%s632 + $0x28] sm:$0xf]
          %v644 = vld [vmem:[%s632 + $0x2c] sm:$0xf]
          %v645 = vld [vmem:[%s632 + $0x30] sm:$0xf]
          %v646 = vld [vmem:[%s632 + $0x34] sm:$0xf]
          %v647 = vld [vmem:[%s632 + $0x38] sm:$0xf]
          %v648 = vld [vmem:[%s632 + $0x3c] sm:$0xf]
          %v649 = vunpack.c.l.bf16 %v633
          %v650 = vunpack.c.l.bf16 %v634
          %v651 = vunpack.c.l.bf16 %v635
          %v652 = vunpack.c.l.bf16 %v636
          %v653 = vunpack.c.l.bf16 %v637
          %v654 = vunpack.c.l.bf16 %v638
          %v655 = vunpack.c.l.bf16 %v639
          %v656 = vunpack.c.l.bf16 %v640
          %v657 = vunpack.c.l.bf16 %v641
          %v658 = vunpack.c.l.bf16 %v642
          %v659 = vunpack.c.l.bf16 %v643
          %v660 = vunpack.c.l.bf16 %v644
          %v661 = vunpack.c.l.bf16 %v645
          %v662 = vunpack.c.l.bf16 %v646
          %v663 = vunpack.c.l.bf16 %v647
          %v664 = vunpack.c.l.bf16 %v648
          %v665 = vld [vmem:[#allocation2] sm:$0xff]
          %v666 = vld [vmem:[#allocation2 + $0x8] sm:$0xff]
          %v667 = vld [vmem:[#allocation2 + $0x10] sm:$0xff]
          %v668 = vld [vmem:[#allocation2 + $0x18] sm:$0xff]
          %v669 = vld [vmem:[#allocation2 + $0x20] sm:$0xff]
          %v670 = vld [vmem:[#allocation2 + $0x28] sm:$0xff]
          %v671 = vld [vmem:[#allocation2 + $0x30] sm:$0xff]
          %v672 = vld [vmem:[#allocation2 + $0x38] sm:$0xff]
          %v673 = vld [vmem:[#allocation2 + $0x40] sm:$0xff]
          %v674 = vld [vmem:[#allocation2 + $0x48] sm:$0xff]
          %v675 = vld [vmem:[#allocation2 + $0x50] sm:$0xff]
          %v676 = vld [vmem:[#allocation2 + $0x58] sm:$0xff]
          %v677 = vld [vmem:[#allocation2 + $0x60] sm:$0xff]
          %v678 = vld [vmem:[#allocation2 + $0x68] sm:$0xff]
          %v679 = vld [vmem:[#allocation2 + $0x70] sm:$0xff]
          %v680 = vld [vmem:[#allocation2 + $0x78] sm:$0xff]
          %v681 = vld [vmem:[%s2] sm:$0xff]
          %v682 = vld [vmem:[%s2 + $0x8] sm:$0xff]
          %v683 = vld [vmem:[%s2 + $0x10] sm:$0xff]
          %v684 = vld [vmem:[%s2 + $0x18] sm:$0xff]
          %v685 = vld [vmem:[%s2 + $0x20] sm:$0xff]
          %v686 = vld [vmem:[%s2 + $0x28] sm:$0xff]
          %v687 = vld [vmem:[%s2 + $0x30] sm:$0xff]
          %v688 = vld [vmem:[%s2 + $0x38] sm:$0xff]
          %v689 = vld [vmem:[%s2 + $0x40] sm:$0xff]
          %v690 = vld [vmem:[%s2 + $0x48] sm:$0xff]
          %v691 = vld [vmem:[%s2 + $0x50] sm:$0xff]
          %v692 = vld [vmem:[%s2 + $0x58] sm:$0xff]
          %v693 = vld [vmem:[%s2 + $0x60] sm:$0xff]
          %v694 = vld [vmem:[%s2 + $0x68] sm:$0xff]
          %v695 = vld [vmem:[%s2 + $0x70] sm:$0xff]
          %v696 = vld [vmem:[%s2 + $0x78] sm:$0xff]
          %v697 = vld [vmem:[%s3] sm:$0xff]
          %v698 = vld [vmem:[%s3 + $0x8] sm:$0xff]
          %v699 = vld [vmem:[%s3 + $0x10] sm:$0xff]
          %v700 = vld [vmem:[%s3 + $0x18] sm:$0xff]
          %v701 = vld [vmem:[%s3 + $0x20] sm:$0xff]
          %v702 = vld [vmem:[%s3 + $0x28] sm:$0xff]
          %v703 = vld [vmem:[%s3 + $0x30] sm:$0xff]
          %v704 = vld [vmem:[%s3 + $0x38] sm:$0xff]
          %v705 = vld [vmem:[%s3 + $0x40] sm:$0xff]
          %v706 = vld [vmem:[%s3 + $0x48] sm:$0xff]
          %v707 = vld [vmem:[%s3 + $0x50] sm:$0xff]
          %v708 = vld [vmem:[%s3 + $0x58] sm:$0xff]
          %v709 = vld [vmem:[%s3 + $0x60] sm:$0xff]
          %v710 = vld [vmem:[%s3 + $0x68] sm:$0xff]
          %v711 = vld [vmem:[%s3 + $0x70] sm:$0xff]
          %v712 = vld [vmem:[%s3 + $0x78] sm:$0xff]
          %713 = vmatpush.msra.mxu0 %v712
          %714 = vmatpush.msra.mxu0 %v711
          %715 = vmatpush.msra.mxu0 %v710
          %716 = vmatpush.msra.mxu0 %v709
          %717 = vmatpush.msra.mxu0 %v708
          %718 = vmatpush.msra.mxu0 %v707
          %719 = vmatpush.msra.mxu0 %v706
          %720 = vmatpush.msra.mxu0 %v705
          %721 = vmatpush.msra.mxu0 %v704
          %722 = vmatpush.msra.mxu0 %v703
          %723 = vmatpush.msra.mxu0 %v702
          %724 = vmatpush.msra.mxu0 %v701
          %725 = vmatpush.msra.mxu0 %v700
          %726 = vmatpush.msra.mxu0 %v699
          %727 = vmatpush.msra.mxu0 %v698
          %728 = vmatpush.msra.mxu0 %v697
          %729 = vmatmul.f32.gmra.mxu0 %v649
          %v730 = vpop.f32.mrf.mxu0
          %v731 = vadd.f32 0.0, %v730
          %732 = vmatmul.f32.gmra.mxu0 %v650
          %v733 = vpop.f32.mrf.mxu0
          %v734 = vadd.f32 0.0, %v733
          %735 = vmatmul.f32.gmra.mxu0 %v651
          %v736 = vpop.f32.mrf.mxu0
          %v737 = vadd.f32 0.0, %v736
          %738 = vmatmul.f32.gmra.mxu0 %v652
          %v739 = vpop.f32.mrf.mxu0
          %v740 = vadd.f32 0.0, %v739
          %741 = vmatmul.f32.gmra.mxu0 %v653
          %v742 = vpop.f32.mrf.mxu0
          %v743 = vadd.f32 0.0, %v742
          %744 = vmatmul.f32.gmra.mxu0 %v654
          %v745 = vpop.f32.mrf.mxu0
          %v746 = vadd.f32 0.0, %v745
          %747 = vmatmul.f32.gmra.mxu0 %v655
          %v748 = vpop.f32.mrf.mxu0
          %v749 = vadd.f32 0.0, %v748
          %750 = vmatmul.f32.gmra.mxu0 %v656
          %v751 = vpop.f32.mrf.mxu0
          %v752 = vadd.f32 0.0, %v751
          %753 = vmatmul.f32.gmra.mxu0 %v657
          %v754 = vpop.f32.mrf.mxu0
          %v755 = vadd.f32 0.0, %v754
          %756 = vmatmul.f32.gmra.mxu0 %v658
          %v757 = vpop.f32.mrf.mxu0
          %v758 = vadd.f32 0.0, %v757
          %759 = vmatmul.f32.gmra.mxu0 %v659
          %v760 = vpop.f32.mrf.mxu0
          %v761 = vadd.f32 0.0, %v760
          %762 = vmatmul.f32.gmra.mxu0 %v660
          %v763 = vpop.f32.mrf.mxu0
          %v764 = vadd.f32 0.0, %v763
          %765 = vmatmul.f32.gmra.mxu0 %v661
          %v766 = vpop.f32.mrf.mxu0
          %v767 = vadd.f32 0.0, %v766
          %768 = vmatmul.f32.gmra.mxu0 %v662
          %v769 = vpop.f32.mrf.mxu0
          %v770 = vadd.f32 0.0, %v769
          %771 = vmatmul.f32.gmra.mxu0 %v663
          %v772 = vpop.f32.mrf.mxu0
          %v773 = vadd.f32 0.0, %v772
          %774 = vmatmul.f32.gmra.mxu0 %v664
          %v775 = vpop.f32.mrf.mxu0
          %v776 = vadd.f32 0.0, %v775
          %777 = vdwg.mxu0
          %778 = vmatpush.msra.mxu0 %v696
          %779 = vmatpush.msra.mxu0 %v695
          %780 = vmatpush.msra.mxu0 %v694
          %781 = vmatpush.msra.mxu0 %v693
          %782 = vmatpush.msra.mxu0 %v692
          %783 = vmatpush.msra.mxu0 %v691
          %784 = vmatpush.msra.mxu0 %v690
          %785 = vmatpush.msra.mxu0 %v689
          %786 = vmatpush.msra.mxu0 %v688
          %787 = vmatpush.msra.mxu0 %v687
          %788 = vmatpush.msra.mxu0 %v686
          %789 = vmatpush.msra.mxu0 %v685
          %790 = vmatpush.msra.mxu0 %v684
          %791 = vmatpush.msra.mxu0 %v683
          %792 = vmatpush.msra.mxu0 %v682
          %793 = vmatpush.msra.mxu0 %v681
          %794 = vmatmul.f32.gmra.mxu0 %v665
          %v795 = vpop.f32.mrf.mxu0
          %v796 = vadd.f32 %v731, %v795
          %797 = vmatmul.f32.gmra.mxu0 %v666
          %v798 = vpop.f32.mrf.mxu0
          %v799 = vadd.f32 %v734, %v798
          %800 = vmatmul.f32.gmra.mxu0 %v667
          %v801 = vpop.f32.mrf.mxu0
          %v802 = vadd.f32 %v737, %v801
          %803 = vmatmul.f32.gmra.mxu0 %v668
          %v804 = vpop.f32.mrf.mxu0
          %v805 = vadd.f32 %v740, %v804
          %806 = vmatmul.f32.gmra.mxu0 %v669
          %v807 = vpop.f32.mrf.mxu0
          %v808 = vadd.f32 %v743, %v807
          %809 = vmatmul.f32.gmra.mxu0 %v670
          %v810 = vpop.f32.mrf.mxu0
          %v811 = vadd.f32 %v746, %v810
          %812 = vmatmul.f32.gmra.mxu0 %v671
          %v813 = vpop.f32.mrf.mxu0
          %v814 = vadd.f32 %v749, %v813
          %815 = vmatmul.f32.gmra.mxu0 %v672
          %v816 = vpop.f32.mrf.mxu0
          %v817 = vadd.f32 %v752, %v816
          %818 = vmatmul.f32.gmra.mxu0 %v673
          %v819 = vpop.f32.mrf.mxu0
          %v820 = vadd.f32 %v755, %v819
          %821 = vmatmul.f32.gmra.mxu0 %v674
          %v822 = vpop.f32.mrf.mxu0
          %v823 = vadd.f32 %v758, %v822
          %824 = vmatmul.f32.gmra.mxu0 %v675
          %v825 = vpop.f32.mrf.mxu0
          %v826 = vadd.f32 %v761, %v825
          %827 = vmatmul.f32.gmra.mxu0 %v676
          %v828 = vpop.f32.mrf.mxu0
          %v829 = vadd.f32 %v764, %v828
          %830 = vmatmul.f32.gmra.mxu0 %v677
          %v831 = vpop.f32.mrf.mxu0
          %v832 = vadd.f32 %v767, %v831
          %833 = vmatmul.f32.gmra.mxu0 %v678
          %v834 = vpop.f32.mrf.mxu0
          %v835 = vadd.f32 %v770, %v834
          %836 = vmatmul.f32.gmra.mxu0 %v679
          %v837 = vpop.f32.mrf.mxu0
          %v838 = vadd.f32 %v773, %v837
          %839 = vmatmul.f32.gmra.mxu0 %v680
          %v840 = vpop.f32.mrf.mxu0
          %v841 = vadd.f32 %v776, %v840
          %842 = vdwg.mxu0
          %v843 = vld [vmem:[%s4] sm:$0x1]
          %v845 = vperm.slane %v843, 0
          %v847 = vadd.f32 %v796, %v845
          %v848 = vadd.f32 %v799, %v845
          %v849 = vadd.f32 %v802, %v845
          %v850 = vadd.f32 %v805, %v845
          %v851 = vadd.f32 %v808, %v845
          %v852 = vadd.f32 %v811, %v845
          %v853 = vadd.f32 %v814, %v845
          %v854 = vadd.f32 %v817, %v845
          %v855 = vadd.f32 %v820, %v845
          %v856 = vadd.f32 %v823, %v845
          %v857 = vadd.f32 %v826, %v845
          %v858 = vadd.f32 %v829, %v845
          %v859 = vadd.f32 %v832, %v845
          %v860 = vadd.f32 %v835, %v845
          %v861 = vadd.f32 %v838, %v845
          %v862 = vadd.f32 %v841, %v845
          %vm863 = vcmp.ge.f32.partialorder %v847, 0.0
          %vm864 = vcmp.ge.f32.partialorder %v848, 0.0
          %vm865 = vcmp.ge.f32.partialorder %v849, 0.0
          %vm866 = vcmp.ge.f32.partialorder %v850, 0.0
          %vm867 = vcmp.ge.f32.partialorder %v851, 0.0
          %vm868 = vcmp.ge.f32.partialorder %v852, 0.0
          %vm869 = vcmp.ge.f32.partialorder %v853, 0.0
          %vm870 = vcmp.ge.f32.partialorder %v854, 0.0
          %vm871 = vcmp.ge.f32.partialorder %v855, 0.0
          %vm872 = vcmp.ge.f32.partialorder %v856, 0.0
          %vm873 = vcmp.ge.f32.partialorder %v857, 0.0
          %vm874 = vcmp.ge.f32.partialorder %v858, 0.0
          %vm875 = vcmp.ge.f32.partialorder %v859, 0.0
          %vm876 = vcmp.ge.f32.partialorder %v860, 0.0
          %vm877 = vcmp.ge.f32.partialorder %v861, 0.0
          %vm878 = vcmp.ge.f32.partialorder %v862, 0.0
          %v879 = vmul.f32 %v847, 0.01
          %v880 = vmul.f32 %v848, 0.01
          %v881 = vmul.f32 %v849, 0.01
          %v882 = vmul.f32 %v850, 0.01
          %v883 = vmul.f32 %v851, 0.01
          %v884 = vmul.f32 %v852, 0.01
          %v885 = vmul.f32 %v853, 0.01
          %v886 = vmul.f32 %v854, 0.01
          %v887 = vmul.f32 %v855, 0.01
          %v888 = vmul.f32 %v856, 0.01
          %v889 = vmul.f32 %v857, 0.01
          %v890 = vmul.f32 %v858, 0.01
          %v891 = vmul.f32 %v859, 0.01
          %v892 = vmul.f32 %v860, 0.01
          %v893 = vmul.f32 %v861, 0.01
          %v894 = vmul.f32 %v862, 0.01
          %v895 = vsel %vm863, %v847, %v879
          %v896 = vsel %vm864, %v848, %v880
          %v897 = vsel %vm865, %v849, %v881
          %v898 = vsel %vm866, %v850, %v882
          %v899 = vsel %vm867, %v851, %v883
          %v900 = vsel %vm868, %v852, %v884
          %v901 = vsel %vm869, %v853, %v885
          %v902 = vsel %vm870, %v854, %v886
          %v903 = vsel %vm871, %v855, %v887
          %v904 = vsel %vm872, %v856, %v888
          %v905 = vsel %vm873, %v857, %v889
          %v906 = vsel %vm874, %v858, %v890
          %v907 = vsel %vm875, %v859, %v891
          %v908 = vsel %vm876, %v860, %v892
          %v909 = vsel %vm877, %v861, %v893
          %v910 = vsel %vm878, %v862, %v894
          %v911 = vld [vmem:[%s5] sm:$0xff]
          %v912 = vld [vmem:[%s5 + $0x8] sm:$0xff]
          %v913 = vld [vmem:[%s5 + $0x10] sm:$0xff]
          %v914 = vld [vmem:[%s5 + $0x18] sm:$0xff]
          %v915 = vld [vmem:[%s5 + $0x20] sm:$0xff]
          %v916 = vld [vmem:[%s5 + $0x28] sm:$0xff]
          %v917 = vld [vmem:[%s5 + $0x30] sm:$0xff]
          %v918 = vld [vmem:[%s5 + $0x38] sm:$0xff]
          %v919 = vld [vmem:[%s5 + $0x40] sm:$0xff]
          %v920 = vld [vmem:[%s5 + $0x48] sm:$0xff]
          %v921 = vld [vmem:[%s5 + $0x50] sm:$0xff]
          %v922 = vld [vmem:[%s5 + $0x58] sm:$0xff]
          %v923 = vld [vmem:[%s5 + $0x60] sm:$0xff]
          %v924 = vld [vmem:[%s5 + $0x68] sm:$0xff]
          %v925 = vld [vmem:[%s5 + $0x70] sm:$0xff]
          %v926 = vld [vmem:[%s5 + $0x78] sm:$0xff]
          %927 = vmatpush.msra.mxu0 %v926
          %928 = vmatpush.msra.mxu0 %v925
          %929 = vmatpush.msra.mxu0 %v924
          %930 = vmatpush.msra.mxu0 %v923
          %931 = vmatpush.msra.mxu0 %v922
          %932 = vmatpush.msra.mxu0 %v921
          %933 = vmatpush.msra.mxu0 %v920
          %934 = vmatpush.msra.mxu0 %v919
          %935 = vmatpush.msra.mxu0 %v918
          %936 = vmatpush.msra.mxu0 %v917
          %937 = vmatpush.msra.mxu0 %v916
          %938 = vmatpush.msra.mxu0 %v915
          %939 = vmatpush.msra.mxu0 %v914
          %940 = vmatpush.msra.mxu0 %v913
          %941 = vmatpush.msra.mxu0 %v912
          %942 = vmatpush.msra.mxu0 %v911
          %943 = vmatmul.f32.gmra.mxu0 %v895
          %v944 = vpop.f32.mrf.mxu0
          %v945 = vadd.f32 0.0, %v944
          %946 = vmatmul.f32.gmra.mxu0 %v896
          %v947 = vpop.f32.mrf.mxu0
          %v948 = vadd.f32 0.0, %v947
          %949 = vmatmul.f32.gmra.mxu0 %v897
          %v950 = vpop.f32.mrf.mxu0
          %v951 = vadd.f32 0.0, %v950
          %952 = vmatmul.f32.gmra.mxu0 %v898
          %v953 = vpop.f32.mrf.mxu0
          %v954 = vadd.f32 0.0, %v953
          %955 = vmatmul.f32.gmra.mxu0 %v899
          %v956 = vpop.f32.mrf.mxu0
          %v957 = vadd.f32 0.0, %v956
          %958 = vmatmul.f32.gmra.mxu0 %v900
          %v959 = vpop.f32.mrf.mxu0
          %v960 = vadd.f32 0.0, %v959
          %961 = vmatmul.f32.gmra.mxu0 %v901
          %v962 = vpop.f32.mrf.mxu0
          %v963 = vadd.f32 0.0, %v962
          %964 = vmatmul.f32.gmra.mxu0 %v902
          %v965 = vpop.f32.mrf.mxu0
          %v966 = vadd.f32 0.0, %v965
          %967 = vmatmul.f32.gmra.mxu0 %v903
          %v968 = vpop.f32.mrf.mxu0
          %v969 = vadd.f32 0.0, %v968
          %970 = vmatmul.f32.gmra.mxu0 %v904
          %v971 = vpop.f32.mrf.mxu0
          %v972 = vadd.f32 0.0, %v971
          %973 = vmatmul.f32.gmra.mxu0 %v905
          %v974 = vpop.f32.mrf.mxu0
          %v975 = vadd.f32 0.0, %v974
          %976 = vmatmul.f32.gmra.mxu0 %v906
          %v977 = vpop.f32.mrf.mxu0
          %v978 = vadd.f32 0.0, %v977
          %979 = vmatmul.f32.gmra.mxu0 %v907
          %v980 = vpop.f32.mrf.mxu0
          %v981 = vadd.f32 0.0, %v980
          %982 = vmatmul.f32.gmra.mxu0 %v908
          %v983 = vpop.f32.mrf.mxu0
          %v984 = vadd.f32 0.0, %v983
          %985 = vmatmul.f32.gmra.mxu0 %v909
          %v986 = vpop.f32.mrf.mxu0
          %v987 = vadd.f32 0.0, %v986
          %988 = vmatmul.f32.gmra.mxu0 %v910
          %v989 = vpop.f32.mrf.mxu0
          %v990 = vadd.f32 0.0, %v989
          %991 = vdwg.mxu0
          %v992 = vpack.c.bf16 %v945, %v945
          %v993 = vpack.c.bf16 %v948, %v948
          %v994 = vpack.c.bf16 %v951, %v951
          %v995 = vpack.c.bf16 %v954, %v954
          %v996 = vpack.c.bf16 %v957, %v957
          %v997 = vpack.c.bf16 %v960, %v960
          %v998 = vpack.c.bf16 %v963, %v963
          %v999 = vpack.c.bf16 %v966, %v966
          %v1000 = vpack.c.bf16 %v969, %v969
          %v1001 = vpack.c.bf16 %v972, %v972
          %v1002 = vpack.c.bf16 %v975, %v975
          %v1003 = vpack.c.bf16 %v978, %v978
          %v1004 = vpack.c.bf16 %v981, %v981
          %v1005 = vpack.c.bf16 %v984, %v984
          %v1006 = vpack.c.bf16 %v987, %v987
          %v1007 = vpack.c.bf16 %v990, %v990
          %1008 = vst [vmem:[%s372] sm:$0xf] %v992
          %1009 = vst [vmem:[%s372 + $0x4] sm:$0xf] %v993
          %1010 = vst [vmem:[%s372 + $0x8] sm:$0xf] %v994
          %1011 = vst [vmem:[%s372 + $0xc] sm:$0xf] %v995
          %1012 = vst [vmem:[%s372 + $0x10] sm:$0xf] %v996
          %1013 = vst [vmem:[%s372 + $0x14] sm:$0xf] %v997
          %1014 = vst [vmem:[%s372 + $0x18] sm:$0xf] %v998
          %1015 = vst [vmem:[%s372 + $0x1c] sm:$0xf] %v999
          %1016 = vst [vmem:[%s372 + $0x20] sm:$0xf] %v1000
          %1017 = vst [vmem:[%s372 + $0x24] sm:$0xf] %v1001
          %1018 = vst [vmem:[%s372 + $0x28] sm:$0xf] %v1002
          %1019 = vst [vmem:[%s372 + $0x2c] sm:$0xf] %v1003
          %1020 = vst [vmem:[%s372 + $0x30] sm:$0xf] %v1004
          %1021 = vst [vmem:[%s372 + $0x34] sm:$0xf] %v1005
          %1022 = vst [vmem:[%s372 + $0x38] sm:$0xf] %v1006
          %1023 = vst [vmem:[%s372 + $0x3c] sm:$0xf] %v1007
        $region93: #{gcn_forward.4} parent=80 // pred_fallthru
          _
        %s1024 = smul.u32 16, %s21
        %p1025 = scmp.lt.s32.totalorder %s1024, 31
        %s1026 = scalar_select %p1025, %s1024, 31
        %s1027 = smul.addr %s1026, 4
        %s1028 = scalar_lea.vmem %s6, %s1027
        // Predicated region
        $region94: #{gcn_forward.4} parent=80 // pred_check
          %p1029 = pneg %p180
        $region95: #{gcn_forward.4} parent=80 // pred_check_branch
          %1031 = sbr.rel (%p1029) target = $region97
        $region96: #{gcn_forward.4} parent=80 // pred_region
          %s1032 = smul.u32 16, %s21
        $region97: #{gcn_forward.4} parent=80 // pred_fallthru
          _
      $region81: #{gcn_forward.4} parent=5 // pred_fallthru
        _
      %p1033 = scmp.le.s32.totalorder 2, %s12
      // Predicated region
      $region98: #{gcn_forward.4} parent=5 // pred_check
        %p1034 = pneg %p1033
      $region99: #{gcn_forward.4} parent=5 // pred_check_branch
        %1036 = sbr.rel (%p1034) target = $region101
      $region100: #{gcn_forward.4} parent=5 // pred_region
        %s1037 = ssub.s32 %s12, 2
        // Predicated region
        $region102: #{gcn_forward.4} parent=100 // pred_check
          %p1038 = pneg %p186
        $region103: #{gcn_forward.4} parent=100 // pred_check_branch
          %1040 = sbr.rel (%p1038) target = $region105
        $region104: #{gcn_forward.4} parent=100 // pred_region
          %s1041 = smul.u32 16, %s23
          %p1042 = scmp.lt.s32.totalorder %s1041, 31
          %s1043 = scalar_select %p1042, %s1041, 31
          %s1044 = smul.addr %s1043, 4
          %s1045 = scalar_lea.vmem %s6, %s1044
        $region105: #{gcn_forward.4} parent=100 // pred_fallthru
          _
      $region101: #{gcn_forward.4} parent=5 // pred_fallthru
        _
    $region6: #{gcn_forward.4} parent=1 // loop_footer
      %s16 = sadd.s32 1, %s12
    $region7: #{gcn_forward.4} parent=1 // loop_footer_branch
      %11 = sbr.rel target = $region3
    $region8: #{gcn_forward.4} parent=1 // loop_exit
      _

</llo_original>
